<compile_context>
chip_gen: v7x
topology: tpu7x:2x2x1
jax: 0.10.0
libtpu: 0.0.40
codegen_flags: <defaults>
</compile_context>

<pallas_src>
import functools
import math

import jax
import jax.numpy as jnp
from jax import lax
from jax.experimental import pallas as pl
from jax.experimental.pallas import tpu as pltpu

EPS = 1e-5
CP = 128      # padded channel width (TPU lane count)


def _pick_block(n):
    """Images per grid step; keep >=2 grid steps so megacore can shard."""
    for nb in (8, 4, 2):
        if n % nb == 0 and n // nb >= 2:
            return nb
    return 1


# ----------------------------------------------------------------------------
# Pallas kernel: NB images per grid step, channels padded to 128 lanes.
# ----------------------------------------------------------------------------
def bottleneck_kernel(*refs, half_res, has_shortcut, NB, H, W, PADL):
    it = iter(refs)
    x_ref = next(it)
    xs_ref = next(it) if half_res else None          # pre-decimated shortcut input
    w1_ref = next(it); b1_ref = next(it)
    w2_ref = next(it); b2_ref = next(it)
    w3_ref = next(it); b3_ref = next(it)
    o_ref = next(it)
    pad_ref = next(it)                               # padded h1 scratch
    col_ref = next(it)                               # im2col slab scratch

    s = 2 if half_res else 1
    Ho, Wo = H // s, W // s
    M = NB * Ho * Wo
    Wpad = pad_ref.shape[2]

    # --- C1 (1x1 conv, no bias) + BN1 (folded) + ReLU, all NB images at once -
    xm = x_ref[...].reshape(NB * H * W, CP)                       # bf16
    h1 = jnp.dot(xm, w1_ref[...], preferred_element_type=jnp.float32)
    h1 = jnp.maximum(h1 + b1_ref[...], 0.0)                       # (NB*H*W, CP) f32

    # --- zero the 1-pixel conv border strips (every step: the batch axis is
    # "parallel", so first-step-only init is unsafe under megacore sharding).
    # Column strips are 2-wide at even offsets so bf16 packed-sublane stores
    # stay word-aligned.
    zrow = jnp.zeros((NB, 1, Wpad, CP), pad_ref.dtype)
    pad_ref[:, 0:1, :, :] = zrow
    pad_ref[:, H + 1:H + 2, :, :] = zrow
    zcol = jnp.zeros((NB, H, 2, CP), pad_ref.dtype)
    pad_ref[:, 1:H + 1, PADL - 2:PADL, :] = zcol
    pad_ref[:, 1:H + 1, PADL + W:PADL + W + 2, :] = zcol

    # interior occupies rows [1, H+1), cols [PADL, PADL+W)  (word aligned)
    pad_ref[:, 1:H + 1, PADL:PADL + W, :] = (
        h1.reshape(NB, H, W, CP).astype(pad_ref.dtype))

    # --- im2col: 9 shifted/decimated windows -> one contiguous bf16 slab -----
    for dh in range(3):
        for dw in range(3):
            t = dh * 3 + dw
            if half_res:
                win = pad_ref[:, pl.ds(dh, Ho, stride=2),
                              pl.ds(PADL - 1 + dw, Wo, stride=2), :]
            else:
                win = pad_ref[:, dh:dh + Ho,
                              PADL - 1 + dw:PADL - 1 + dw + Wo, :]
            col_ref[:, t * CP:(t + 1) * CP] = (
                win.reshape(M, CP).astype(jnp.bfloat16))

    # --- C2 (3x3 conv, stride s, bias) + BN2 (folded) + ReLU: one K=1152 dot -
    h2 = jnp.dot(col_ref[...], w2_ref[...], preferred_element_type=jnp.float32)
    h2 = jnp.maximum(h2 + b2_ref[...], 0.0).astype(jnp.bfloat16)  # (M, CP)

    # --- shortcut input at output resolution --------------------------------
    xs = xs_ref[...].reshape(M, CP) if half_res else xm           # bf16 (M, CP)

    # --- C3 (1x1 conv, no bias) + BN3 (folded) [+ fused 1x1 shortcut] -------
    if has_shortcut:
        h23 = jnp.concatenate([h2, xs], axis=1)                   # (M, 256) bf16
        out = jnp.dot(h23, w3_ref[...], preferred_element_type=jnp.float32)
        out = out + b3_ref[...]
    else:
        out = jnp.dot(h2, w3_ref[...], preferred_element_type=jnp.float32)
        out = out + b3_ref[...] + xs.astype(jnp.float32)          # identity residual

    o_ref[...] = jnp.maximum(out, 0.0).reshape(NB, Ho * Wo, CP)   # lane-dense


# ----------------------------------------------------------------------------
# Wrapper over pre-padded NHWC bf16 activations (what a full model would keep).
# ----------------------------------------------------------------------------
def bottleneck_forward_padded(x_pad, kp, half_res):
    N, H, W, _ = x_pad.shape
    s = 2 if half_res else 1
    Ho, Wo = H // s, W // s
    has_shortcut = kp["has_shortcut"]
    NB = _pick_block(N)
    PADL = 8 if half_res else 16
    pad_dtype = jnp.float32 if half_res else jnp.bfloat16
    Wpad = W + 2 * PADL

    def full_spec(a):
        nd = a.ndim
        return pl.BlockSpec(a.shape, lambda n, _nd=nd: (0,) * _nd)

    args = [x_pad]
    in_specs = [pl.BlockSpec((NB, H, W, CP), lambda n: (n, 0, 0, 0))]
    if half_res:
        xs = x_pad[:, ::2, ::2, :]        # decimate shortcut input once, in XLA
        args.append(xs)
        in_specs.append(pl.BlockSpec((NB, Ho, Wo, CP), lambda n: (n, 0, 0, 0)))
    for a in (kp["w1"], kp["b1"], kp["w2"], kp["b2"], kp["w3"], kp["b3"]):
        args.append(a)
        in_specs.append(full_spec(a))

    kernel = functools.partial(bottleneck_kernel, half_res=half_res,
                               has_shortcut=has_shortcut, NB=NB, H=H, W=W,
                               PADL=PADL)

    flops = 2 * N * (H * W * CP * CP
                     + Ho * Wo * 9 * CP * CP
                     + Ho * Wo * (2 if has_shortcut else 1) * CP * CP)
    bytes_accessed = (sum(int(a.size) * a.dtype.itemsize for a in args)
                      + N * Ho * Wo * CP * 4)

    return pl.pallas_call(
        kernel,
        out_shape=jax.ShapeDtypeStruct((N, Ho * Wo, CP), jnp.float32),
        grid=(N // NB,),
        in_specs=in_specs,
        out_specs=pl.BlockSpec((NB, Ho * Wo, CP), lambda n: (n, 0, 0)),
        scratch_shapes=[
            pltpu.VMEM((NB, H + 2, Wpad, CP), pad_dtype),
            pltpu.VMEM((NB * Ho * Wo, 9 * CP), jnp.bfloat16),
        ],
        compiler_params=pltpu.CompilerParams(
            dimension_semantics=("parallel",),
            vmem_limit_bytes=64 * 1024 * 1024),
        cost_estimate=pl.CostEstimate(flops=flops, transcendentals=0,
                                      bytes_accessed=bytes_accessed),
    )(*args)


# ----------------------------------------------------------------------------
# NCHW wrapper (standalone test only; a full model hoists this relayout).
# ----------------------------------------------------------------------------
def bottleneck_forward(x_nchw, kp, half_res):
    N, Cin, H, W = x_nchw.shape
    assert Cin <= CP and kp["cout"] <= CP
    x = jnp.transpose(x_nchw, (0, 2, 3, 1)).astype(jnp.bfloat16)  # NCHW -> NHWC
    x = jnp.pad(x, ((0, 0), (0, 0), (0, 0), (0, CP - Cin)))       # lane-pad channels
    out = bottleneck_forward_padded(x, kp, half_res)
    s = 2 if half_res else 1
    out = out.reshape(N, H // s, W // s, CP)[..., :kp["cout"]]    # drop lane padding
    return jnp.transpose(out, (0, 3, 1, 2))                       # NHWC -> NCHW


# ----------------------------------------------------------------------------
# Deterministic parameter init (mirrors init_layer) + BN folding + lane padding
# ----------------------------------------------------------------------------
def make_params(key, indim, outdim):
    cb = outdim // 4
    k1, k2, k3, k4, k5 = jax.random.split(key, 5)

    def conv_w(k, out_c, in_c, kh, kw):
        n = kh * kw * out_c
        return jax.random.normal(k, (out_c, in_c, kh, kw), jnp.float32) * math.sqrt(2.0 / n)

    w1 = conv_w(k1, cb, indim, 1, 1)                 # C1: no bias
    w2 = conv_w(k2, cb, cb, 3, 3)                    # C2: has bias (PyTorch default)
    fan_in2 = cb * 9
    b2 = jax.random.uniform(k3, (cb,), jnp.float32,
                            -1.0 / math.sqrt(fan_in2), 1.0 / math.sqrt(fan_in2))
    w3 = conv_w(k4, outdim, cb, 1, 1)                # C3: no bias

    def bn_params(c):
        return (jnp.ones((c,), jnp.float32), jnp.zeros((c,), jnp.float32),
                jnp.zeros((c,), jnp.float32), jnp.ones((c,), jnp.float32))

    identity = indim == outdim
    ws = None if identity else conv_w(k5, outdim, indim, 1, 1)

    raw = dict(w1_oihw=w1, w2_oihw=w2, b2=b2, w3_oihw=w3,
               bn1=bn_params(cb), bn2=bn_params(cb), bn3=bn_params(outdim),
               ws_oihw=ws, identity=identity)

    def fold(g, b, m, v):
        scale = g / jnp.sqrt(v + EPS)
        return scale, b - m * scale

    s1, t1 = fold(*raw["bn1"])
    s2, t2 = fold(*raw["bn2"])
    s3, t3 = fold(*raw["bn3"])

    def padw(mat):   # zero-pad (in, out) matmul weight to (CP, CP), cast bf16
        full = jnp.zeros((CP, CP), jnp.float32).at[:mat.shape[0], :mat.shape[1]].set(mat)
        return full.astype(jnp.bfloat16)

    def padb(vec):   # zero-pad bias/shift to (1, CP), keep f32
        return jnp.zeros((1, CP), jnp.float32).at[0, :vec.shape[0]].set(vec)

    # 3x3: (o,i,h,w) -> (h,w,i,o), fold BN2 scale, stack 9 taps along K (im2col).
    w2_taps = (jnp.transpose(w2, (2, 3, 1, 0)) * s2[None, None, None, :]).reshape(9, cb, cb)
    w2_full = (jnp.zeros((9, CP, CP), jnp.float32)
               .at[:, :cb, :cb].set(w2_taps)
               .reshape(9 * CP, CP).astype(jnp.bfloat16))

    w3_pad = padw(w3[:, :, 0, 0].T * s3[None, :])
    if identity:
        w3_arg = w3_pad                                     # (128, 128)
    else:
        ws_pad = padw(ws[:, :, 0, 0].T)
        w3_arg = jnp.concatenate([w3_pad, ws_pad], axis=0)  # fused C3+shortcut (256,128)

    kp = dict(
        w1=padw(w1[:, :, 0, 0].T * s1[None, :]),
        b1=padb(t1),
        w2=w2_full,
        b2=padb(b2 * s2 + t2),
        w3=w3_arg,
        b3=padb(t3),
        has_shortcut=not identity,
        cout=outdim,
    )
    return raw, kp


# ----------------------------------------------------------------------------
# Pure-JAX reference (same math as the PyTorch forward, eval-mode BN)
# ----------------------------------------------------------------------------
def reference_forward(x_nchw, raw, half_res):
    stride = (2, 2) if half_res else (1, 1)

    def conv(x, w, s, pad):
        return lax.conv_general_dilated(x, w, window_strides=s, padding=pad,
                                        dimension_numbers=("NCHW", "OIHW", "NCHW"))

    def bn(x, p):
        g, b, m, v = p
        sc = (g / jnp.sqrt(v + EPS))[None, :, None, None]
        return (x - m[None, :, None, None]) * sc + b[None, :, None, None]

    out = conv(x_nchw, raw["w1_oihw"], (1, 1), "VALID")
    out = jax.nn.relu(bn(out, raw["bn1"]))
    out = conv(out, raw["w2_oihw"], stride, [(1, 1), (1, 1)]) + raw["b2"][None, :, None, None]
    out = jax.nn.relu(bn(out, raw["bn2"]))
    out = conv(out, raw["w3_oihw"], (1, 1), "VALID")
    out = bn(out, raw["bn3"])
    short = x_nchw if raw["identity"] else conv(x_nchw, raw["ws_oihw"], stride, "VALID")
    return jax.nn.relu(out + short)


if __name__ == "__main__":
    key = jax.random.PRNGKey(0)
    N, H, W = 2, 16, 16
    configs = [
        ("1x1_shortcut_half_res", 8, 16, True),    # indim != outdim, stride 2
        ("identity_shortcut",    16, 16, False),   # indim == outdim, stride 1
    ]

    for idx, (name, indim, outdim, half_res) in enumerate(configs):
        k = jax.random.fold_in(key, idx)
        kx, kw = jax.random.split(k)
        x = jax.random.normal(kx, (N, indim, H, W), jnp.float32)
        raw, kp = make_params(kw, indim, outdim)

        out = jax.block_until_ready(bottleneck_forward(x, kp, half_res))
        ref = reference_forward(x, raw, half_res)
        assert out.shape == ref.shape, (name, out.shape, ref.shape)
        tol = 3e-2 * (1.0 + float(jnp.max(jnp.abs(ref))))
        max_err = float(jnp.max(jnp.abs(out - ref)))
        assert max_err < tol, f"{name}: max abs err {max_err} (tol {tol})"

    print("KERNEL_OK")
</pallas_src>

<mosaic_0001>
module attributes {stable_mosaic.version = 11 : i64} {
  func.func @bottleneck_kernel(%arg0: i32, %arg1: memref<1x16x16x128xbf16, #tpu.memory_space<vmem>>, %arg2: memref<1x8x8x128xbf16, #tpu.memory_space<vmem>>, %arg3: memref<128x128xbf16, #tpu.memory_space<vmem>>, %arg4: memref<1x128xf32, #tpu.memory_space<vmem>>, %arg5: memref<1152x128xbf16, #tpu.memory_space<vmem>>, %arg6: memref<1x128xf32, #tpu.memory_space<vmem>>, %arg7: memref<256x128xbf16, #tpu.memory_space<vmem>>, %arg8: memref<1x128xf32, #tpu.memory_space<vmem>>, %arg9: memref<1x64x128xf32, #tpu.memory_space<vmem>>, %arg10: memref<1x18x32x128xf32, #tpu.memory_space<vmem>>, %arg11: memref<64x1152xbf16, #tpu.memory_space<vmem>>) attributes {dimension_semantics = [#tpu.dimension_semantics<parallel>], iteration_bounds = array<i64: 2>, scalar_prefetch = 0 : i64, scratch_operands = 2 : i64, tpu.core_type = #tpu.core_type<tc>, window_params = [{transform_indices = @transform_0, window_bounds = array<i64: 1, 16, 16, 128>}, {transform_indices = @transform_1, window_bounds = array<i64: 1, 8, 8, 128>}, {pipeline_mode = #tpu.pipeline_mode<synchronous>, transform_indices = @transform_2, window_bounds = array<i64: 128, 128>}, {pipeline_mode = #tpu.pipeline_mode<synchronous>, transform_indices = @transform_3, window_bounds = array<i64: 1, 128>}, {pipeline_mode = #tpu.pipeline_mode<synchronous>, transform_indices = @transform_4, window_bounds = array<i64: 1152, 128>}, {pipeline_mode = #tpu.pipeline_mode<synchronous>, transform_indices = @transform_5, window_bounds = array<i64: 1, 128>}, {pipeline_mode = #tpu.pipeline_mode<synchronous>, transform_indices = @transform_6, window_bounds = array<i64: 256, 128>}, {pipeline_mode = #tpu.pipeline_mode<synchronous>, transform_indices = @transform_7, window_bounds = array<i64: 1, 128>}, {transform_indices = @transform_8, window_bounds = array<i64: 1, 64, 128>}]} {
    %c0 = arith.constant 0 : index
    %c0_0 = arith.constant 0 : index
    %c0_1 = arith.constant 0 : index
    %c0_2 = arith.constant 0 : index
    %0 = vector.load %arg1[%c0, %c0_0, %c0_1, %c0_2] : memref<1x16x16x128xbf16, #tpu.memory_space<vmem>>, vector<1x16x16x128xbf16>
    %1 = vector.shape_cast %0 : vector<1x16x16x128xbf16> to vector<256x128xbf16>
    %c0_3 = arith.constant 0 : index
    %c0_4 = arith.constant 0 : index
    %2 = vector.load %arg3[%c0_3, %c0_4] : memref<128x128xbf16, #tpu.memory_space<vmem>>, vector<128x128xbf16>
    %cst = arith.constant dense<0.000000e+00> : vector<256x128xf32>
    %3 = tpu.matmul %1, %2, %cst {dimension_numbers = #tpu.dot_dimension_numbers<[1], [0], [0], [1], [0, 0, 1, 1], [], []>} : vector<256x128xbf16>, vector<128x128xbf16>, vector<256x128xf32> -> vector<256x128xf32>
    %c0_5 = arith.constant 0 : index
    %c0_6 = arith.constant 0 : index
    %4 = vector.load %arg4[%c0_5, %c0_6] : memref<1x128xf32, #tpu.memory_space<vmem>>, vector<1x128xf32>
    %5 = vector.broadcast %4 : vector<1x128xf32> to vector<256x128xf32>
    %6 = arith.addf %3, %5 : vector<256x128xf32>
    %cst_7 = arith.constant 0.000000e+00 : f32
    %7 = vector.broadcast %cst_7 : f32 to vector<256x128xf32>
    %8 = arith.maximumf %6, %7 : vector<256x128xf32>
    %cst_8 = arith.constant 0.000000e+00 : f32
    %9 = vector.broadcast %cst_8 : f32 to vector<1x1x32x128xf32>
    %c0_9 = arith.constant 0 : index
    %c0_10 = arith.constant 0 : index
    %c0_11 = arith.constant 0 : index
    %c0_12 = arith.constant 0 : index
    %10 = vector.load %arg10[%c0_9, %c0_10, %c0_11, %c0_12] : memref<1x18x32x128xf32, #tpu.memory_space<vmem>>, vector<1x1x32x128xf32>
    tpu.vector_store %arg10[%c0_9, %c0_10, %c0_11, %c0_12], %9 {strides = array<i32>} : memref<1x18x32x128xf32, #tpu.memory_space<vmem>>, vector<1x1x32x128xf32>,
    %c0_13 = arith.constant 0 : index
    %c17 = arith.constant 17 : index
    %c0_14 = arith.constant 0 : index
    %c0_15 = arith.constant 0 : index
    %11 = vector.load %arg10[%c0_13, %c17, %c0_14, %c0_15] : memref<1x18x32x128xf32, #tpu.memory_space<vmem>>, vector<1x1x32x128xf32>
    tpu.vector_store %arg10[%c0_13, %c17, %c0_14, %c0_15], %9 {strides = array<i32>} : memref<1x18x32x128xf32, #tpu.memory_space<vmem>>, vector<1x1x32x128xf32>,
    %cst_16 = arith.constant 0.000000e+00 : f32
    %12 = vector.broadcast %cst_16 : f32 to vector<1x16x2x128xf32>
    %c0_17 = arith.constant 0 : index
    %c1 = arith.constant 1 : index
    %c6 = arith.constant 6 : index
    %c0_18 = arith.constant 0 : index
    %13 = vector.load %arg10[%c0_17, %c1, %c6, %c0_18] : memref<1x18x32x128xf32, #tpu.memory_space<vmem>>, vector<1x16x2x128xf32>
    tpu.vector_store %arg10[%c0_17, %c1, %c6, %c0_18], %12 {strides = array<i32>} : memref<1x18x32x128xf32, #tpu.memory_space<vmem>>, vector<1x16x2x128xf32>,
    %c0_19 = arith.constant 0 : index
    %c1_20 = arith.constant 1 : index
    %c24 = arith.constant 24 : index
    %c0_21 = arith.constant 0 : index
    %14 = vector.load %arg10[%c0_19, %c1_20, %c24, %c0_21] : memref<1x18x32x128xf32, #tpu.memory_space<vmem>>, vector<1x16x2x128xf32>
    tpu.vector_store %arg10[%c0_19, %c1_20, %c24, %c0_21], %12 {strides = array<i32>} : memref<1x18x32x128xf32, #tpu.memory_space<vmem>>, vector<1x16x2x128xf32>,
    %15 = vector.shape_cast %8 : vector<256x128xf32> to vector<1x16x16x128xf32>
    %c0_22 = arith.constant 0 : index
    %c1_23 = arith.constant 1 : index
    %c8 = arith.constant 8 : index
    %c0_24 = arith.constant 0 : index
    %16 = vector.load %arg10[%c0_22, %c1_23, %c8, %c0_24] : memref<1x18x32x128xf32, #tpu.memory_space<vmem>>, vector<1x16x16x128xf32>
    tpu.vector_store %arg10[%c0_22, %c1_23, %c8, %c0_24], %15 {strides = array<i32>} : memref<1x18x32x128xf32, #tpu.memory_space<vmem>>, vector<1x16x16x128xf32>,
    %c0_25 = arith.constant 0 : index
    %c0_26 = arith.constant 0 : index
    %c7 = arith.constant 7 : index
    %c0_27 = arith.constant 0 : index
    %17 = tpu.strided_load %arg10[%c0_25, %c0_26, %c7, %c0_27] {strides = array<i32: 1, 2, 2, 1>} : memref<1x18x32x128xf32, #tpu.memory_space<vmem>>, vector<1x8x8x128xf32>
    %18 = vector.shape_cast %17 : vector<1x8x8x128xf32> to vector<64x128xf32>
    %19 = arith.truncf %18 : vector<64x128xf32> to vector<64x128xbf16>
    %c0_28 = arith.constant 0 : index
    %c0_29 = arith.constant 0 : index
    %20 = vector.load %arg11[%c0_28, %c0_29] : memref<64x1152xbf16, #tpu.memory_space<vmem>>, vector<64x128xbf16>
    tpu.vector_store %arg11[%c0_28, %c0_29], %19 {strides = array<i32>} : memref<64x1152xbf16, #tpu.memory_space<vmem>>, vector<64x128xbf16>,
    %c0_30 = arith.constant 0 : index
    %c0_31 = arith.constant 0 : index
    %c8_32 = arith.constant 8 : index
    %c0_33 = arith.constant 0 : index
    %21 = tpu.strided_load %arg10[%c0_30, %c0_31, %c8_32, %c0_33] {strides = array<i32: 1, 2, 2, 1>} : memref<1x18x32x128xf32, #tpu.memory_space<vmem>>, vector<1x8x8x128xf32>
    %22 = vector.shape_cast %21 : vector<1x8x8x128xf32> to vector<64x128xf32>
    %23 = arith.truncf %22 : vector<64x128xf32> to vector<64x128xbf16>
    %c0_34 = arith.constant 0 : index
    %c128 = arith.constant 128 : index
    %24 = vector.load %arg11[%c0_34, %c128] : memref<64x1152xbf16, #tpu.memory_space<vmem>>, vector<64x128xbf16>
    tpu.vector_store %arg11[%c0_34, %c128], %23 {strides = array<i32>} : memref<64x1152xbf16, #tpu.memory_space<vmem>>, vector<64x128xbf16>,
    %c0_35 = arith.constant 0 : index
    %c0_36 = arith.constant 0 : index
    %c9 = arith.constant 9 : index
    %c0_37 = arith.constant 0 : index
    %25 = tpu.strided_load %arg10[%c0_35, %c0_36, %c9, %c0_37] {strides = array<i32: 1, 2, 2, 1>} : memref<1x18x32x128xf32, #tpu.memory_space<vmem>>, vector<1x8x8x128xf32>
    %26 = vector.shape_cast %25 : vector<1x8x8x128xf32> to vector<64x128xf32>
    %27 = arith.truncf %26 : vector<64x128xf32> to vector<64x128xbf16>
    %c0_38 = arith.constant 0 : index
    %c256 = arith.constant 256 : index
    %28 = vector.load %arg11[%c0_38, %c256] : memref<64x1152xbf16, #tpu.memory_space<vmem>>, vector<64x128xbf16>
    tpu.vector_store %arg11[%c0_38, %c256], %27 {strides = array<i32>} : memref<64x1152xbf16, #tpu.memory_space<vmem>>, vector<64x128xbf16>,
    %c0_39 = arith.constant 0 : index
    %c1_40 = arith.constant 1 : index
    %c7_41 = arith.constant 7 : index
    %c0_42 = arith.constant 0 : index
    %29 = tpu.strided_load %arg10[%c0_39, %c1_40, %c7_41, %c0_42] {strides = array<i32: 1, 2, 2, 1>} : memref<1x18x32x128xf32, #tpu.memory_space<vmem>>, vector<1x8x8x128xf32>
    %30 = vector.shape_cast %29 : vector<1x8x8x128xf32> to vector<64x128xf32>
    %31 = arith.truncf %30 : vector<64x128xf32> to vector<64x128xbf16>
    %c0_43 = arith.constant 0 : index
    %c384 = arith.constant 384 : index
    %32 = vector.load %arg11[%c0_43, %c384] : memref<64x1152xbf16, #tpu.memory_space<vmem>>, vector<64x128xbf16>
    tpu.vector_store %arg11[%c0_43, %c384], %31 {strides = array<i32>} : memref<64x1152xbf16, #tpu.memory_space<vmem>>, vector<64x128xbf16>,
    %c0_44 = arith.constant 0 : index
    %c1_45 = arith.constant 1 : index
    %c8_46 = arith.constant 8 : index
    %c0_47 = arith.constant 0 : index
    %33 = tpu.strided_load %arg10[%c0_44, %c1_45, %c8_46, %c0_47] {strides = array<i32: 1, 2, 2, 1>} : memref<1x18x32x128xf32, #tpu.memory_space<vmem>>, vector<1x8x8x128xf32>
    %34 = vector.shape_cast %33 : vector<1x8x8x128xf32> to vector<64x128xf32>
    %35 = arith.truncf %34 : vector<64x128xf32> to vector<64x128xbf16>
    %c0_48 = arith.constant 0 : index
    %c512 = arith.constant 512 : index
    %36 = vector.load %arg11[%c0_48, %c512] : memref<64x1152xbf16, #tpu.memory_space<vmem>>, vector<64x128xbf16>
    tpu.vector_store %arg11[%c0_48, %c512], %35 {strides = array<i32>} : memref<64x1152xbf16, #tpu.memory_space<vmem>>, vector<64x128xbf16>,
    %c0_49 = arith.constant 0 : index
    %c1_50 = arith.constant 1 : index
    %c9_51 = arith.constant 9 : index
    %c0_52 = arith.constant 0 : index
    %37 = tpu.strided_load %arg10[%c0_49, %c1_50, %c9_51, %c0_52] {strides = array<i32: 1, 2, 2, 1>} : memref<1x18x32x128xf32, #tpu.memory_space<vmem>>, vector<1x8x8x128xf32>
    %38 = vector.shape_cast %37 : vector<1x8x8x128xf32> to vector<64x128xf32>
    %39 = arith.truncf %38 : vector<64x128xf32> to vector<64x128xbf16>
    %c0_53 = arith.constant 0 : index
    %c640 = arith.constant 640 : index
    %40 = vector.load %arg11[%c0_53, %c640] : memref<64x1152xbf16, #tpu.memory_space<vmem>>, vector<64x128xbf16>
    tpu.vector_store %arg11[%c0_53, %c640], %39 {strides = array<i32>} : memref<64x1152xbf16, #tpu.memory_space<vmem>>, vector<64x128xbf16>,
    %c0_54 = arith.constant 0 : index
    %c2 = arith.constant 2 : index
    %c7_55 = arith.constant 7 : index
    %c0_56 = arith.constant 0 : index
    %41 = tpu.strided_load %arg10[%c0_54, %c2, %c7_55, %c0_56] {strides = array<i32: 1, 2, 2, 1>} : memref<1x18x32x128xf32, #tpu.memory_space<vmem>>, vector<1x8x8x128xf32>
    %42 = vector.shape_cast %41 : vector<1x8x8x128xf32> to vector<64x128xf32>
    %43 = arith.truncf %42 : vector<64x128xf32> to vector<64x128xbf16>
    %c0_57 = arith.constant 0 : index
    %c768 = arith.constant 768 : index
    %44 = vector.load %arg11[%c0_57, %c768] : memref<64x1152xbf16, #tpu.memory_space<vmem>>, vector<64x128xbf16>
    tpu.vector_store %arg11[%c0_57, %c768], %43 {strides = array<i32>} : memref<64x1152xbf16, #tpu.memory_space<vmem>>, vector<64x128xbf16>,
    %c0_58 = arith.constant 0 : index
    %c2_59 = arith.constant 2 : index
    %c8_60 = arith.constant 8 : index
    %c0_61 = arith.constant 0 : index
    %45 = tpu.strided_load %arg10[%c0_58, %c2_59, %c8_60, %c0_61] {strides = array<i32: 1, 2, 2, 1>} : memref<1x18x32x128xf32, #tpu.memory_space<vmem>>, vector<1x8x8x128xf32>
    %46 = vector.shape_cast %45 : vector<1x8x8x128xf32> to vector<64x128xf32>
    %47 = arith.truncf %46 : vector<64x128xf32> to vector<64x128xbf16>
    %c0_62 = arith.constant 0 : index
    %c896 = arith.constant 896 : index
    %48 = vector.load %arg11[%c0_62, %c896] : memref<64x1152xbf16, #tpu.memory_space<vmem>>, vector<64x128xbf16>
    tpu.vector_store %arg11[%c0_62, %c896], %47 {strides = array<i32>} : memref<64x1152xbf16, #tpu.memory_space<vmem>>, vector<64x128xbf16>,
    %c0_63 = arith.constant 0 : index
    %c2_64 = arith.constant 2 : index
    %c9_65 = arith.constant 9 : index
    %c0_66 = arith.constant 0 : index
    %49 = tpu.strided_load %arg10[%c0_63, %c2_64, %c9_65, %c0_66] {strides = array<i32: 1, 2, 2, 1>} : memref<1x18x32x128xf32, #tpu.memory_space<vmem>>, vector<1x8x8x128xf32>
    %50 = vector.shape_cast %49 : vector<1x8x8x128xf32> to vector<64x128xf32>
    %51 = arith.truncf %50 : vector<64x128xf32> to vector<64x128xbf16>
    %c0_67 = arith.constant 0 : index
    %c1024 = arith.constant 1024 : index
    %52 = vector.load %arg11[%c0_67, %c1024] : memref<64x1152xbf16, #tpu.memory_space<vmem>>, vector<64x128xbf16>
    tpu.vector_store %arg11[%c0_67, %c1024], %51 {strides = array<i32>} : memref<64x1152xbf16, #tpu.memory_space<vmem>>, vector<64x128xbf16>,
    %c0_68 = arith.constant 0 : index
    %c0_69 = arith.constant 0 : index
    %53 = vector.load %arg11[%c0_68, %c0_69] : memref<64x1152xbf16, #tpu.memory_space<vmem>>, vector<64x1152xbf16>
    %c0_70 = arith.constant 0 : index
    %c0_71 = arith.constant 0 : index
    %54 = vector.load %arg5[%c0_70, %c0_71] : memref<1152x128xbf16, #tpu.memory_space<vmem>>, vector<1152x128xbf16>
    %cst_72 = arith.constant dense<0.000000e+00> : vector<64x128xf32>
    %55 = tpu.matmul %53, %54, %cst_72 {dimension_numbers = #tpu.dot_dimension_numbers<[1], [0], [0], [1], [0, 0, 1, 1], [], []>} : vector<64x1152xbf16>, vector<1152x128xbf16>, vector<64x128xf32> -> vector<64x128xf32>
    %c0_73 = arith.constant 0 : index
    %c0_74 = arith.constant 0 : index
    %56 = vector.load %arg6[%c0_73, %c0_74] : memref<1x128xf32, #tpu.memory_space<vmem>>, vector<1x128xf32>
    %57 = vector.broadcast %56 : vector<1x128xf32> to vector<64x128xf32>
    %58 = arith.addf %55, %57 : vector<64x128xf32>
    %cst_75 = arith.constant 0.000000e+00 : f32
    %59 = vector.broadcast %cst_75 : f32 to vector<64x128xf32>
    %60 = arith.maximumf %58, %59 : vector<64x128xf32>
    %61 = arith.truncf %60 : vector<64x128xf32> to vector<64x128xbf16>
    %c0_76 = arith.constant 0 : index
    %c0_77 = arith.constant 0 : index
    %c0_78 = arith.constant 0 : index
    %c0_79 = arith.constant 0 : index
    %62 = vector.load %arg2[%c0_76, %c0_77, %c0_78, %c0_79] : memref<1x8x8x128xbf16, #tpu.memory_space<vmem>>, vector<1x8x8x128xbf16>
    %63 = vector.shape_cast %62 : vector<1x8x8x128xbf16> to vector<64x128xbf16>
    %64 = tpu.concatenate %61, %63 in 1 : vector<64x128xbf16>, vector<64x128xbf16> -> vector<64x256xbf16>
    %c0_80 = arith.constant 0 : index
    %c0_81 = arith.constant 0 : index
    %65 = vector.load %arg7[%c0_80, %c0_81] : memref<256x128xbf16, #tpu.memory_space<vmem>>, vector<256x128xbf16>
    %cst_82 = arith.constant dense<0.000000e+00> : vector<64x128xf32>
    %66 = tpu.matmul %64, %65, %cst_82 {dimension_numbers = #tpu.dot_dimension_numbers<[1], [0], [0], [1], [0, 0, 1, 1], [], []>} : vector<64x256xbf16>, vector<256x128xbf16>, vector<64x128xf32> -> vector<64x128xf32>
    %c0_83 = arith.constant 0 : index
    %c0_84 = arith.constant 0 : index
    %67 = vector.load %arg8[%c0_83, %c0_84] : memref<1x128xf32, #tpu.memory_space<vmem>>, vector<1x128xf32>
    %68 = vector.broadcast %67 : vector<1x128xf32> to vector<64x128xf32>
    %69 = arith.addf %66, %68 : vector<64x128xf32>
    %cst_85 = arith.constant 0.000000e+00 : f32
    %70 = vector.broadcast %cst_85 : f32 to vector<64x128xf32>
    %71 = arith.maximumf %69, %70 : vector<64x128xf32>
    %72 = vector.shape_cast %71 : vector<64x128xf32> to vector<1x64x128xf32>
    %c0_86 = arith.constant 0 : index
    %c0_87 = arith.constant 0 : index
    %c0_88 = arith.constant 0 : index
    %73 = vector.load %arg9[%c0_86, %c0_87, %c0_88] : memref<1x64x128xf32, #tpu.memory_space<vmem>>, vector<1x64x128xf32>
    tpu.vector_store %arg9[%c0_86, %c0_87, %c0_88], %72 {strides = array<i32>} : memref<1x64x128xf32, #tpu.memory_space<vmem>>, vector<1x64x128xf32>,
    return
  }
  func.func @transform_0(%arg0: i32) -> (i32, i32, i32, i32) {
    %c0_i32 = arith.constant 0 : i32
    %c0_i32_0 = arith.constant 0 : i32
    %c0_i32_1 = arith.constant 0 : i32
    %c0_i32_2 = arith.constant 0 : i32
    return %arg0, %c0_i32, %c0_i32_0, %c0_i32_1 : i32, i32, i32, i32
  }
  func.func @transform_1(%arg0: i32) -> (i32, i32, i32, i32) {
    %c0_i32 = arith.constant 0 : i32
    %c0_i32_0 = arith.constant 0 : i32
    %c0_i32_1 = arith.constant 0 : i32
    %c0_i32_2 = arith.constant 0 : i32
    return %arg0, %c0_i32, %c0_i32_0, %c0_i32_1 : i32, i32, i32, i32
  }
  func.func @transform_2(%arg0: i32) -> (i32, i32) {
    %c0_i32 = arith.constant 0 : i32
    %c0_i32_0 = arith.constant 0 : i32
    %c0_i32_1 = arith.constant 0 : i32
    return %c0_i32, %c0_i32_0 : i32, i32
  }
  func.func @transform_3(%arg0: i32) -> (i32, i32) {
    %c0_i32 = arith.constant 0 : i32
    %c0_i32_0 = arith.constant 0 : i32
    %c0_i32_1 = arith.constant 0 : i32
    return %c0_i32, %c0_i32_0 : i32, i32
  }
  func.func @transform_4(%arg0: i32) -> (i32, i32) {
    %c0_i32 = arith.constant 0 : i32
    %c0_i32_0 = arith.constant 0 : i32
    %c0_i32_1 = arith.constant 0 : i32
    return %c0_i32, %c0_i32_0 : i32, i32
  }
  func.func @transform_5(%arg0: i32) -> (i32, i32) {
    %c0_i32 = arith.constant 0 : i32
    %c0_i32_0 = arith.constant 0 : i32
    %c0_i32_1 = arith.constant 0 : i32
    return %c0_i32, %c0_i32_0 : i32, i32
  }
  func.func @transform_6(%arg0: i32) -> (i32, i32) {
    %c0_i32 = arith.constant 0 : i32
    %c0_i32_0 = arith.constant 0 : i32
    %c0_i32_1 = arith.constant 0 : i32
    return %c0_i32, %c0_i32_0 : i32, i32
  }
  func.func @transform_7(%arg0: i32) -> (i32, i32) {
    %c0_i32 = arith.constant 0 : i32
    %c0_i32_0 = arith.constant 0 : i32
    %c0_i32_1 = arith.constant 0 : i32
    return %c0_i32, %c0_i32_0 : i32, i32
  }
  func.func @transform_8(%arg0: i32) -> (i32, i32, i32) {
    %c0_i32 = arith.constant 0 : i32
    %c0_i32_0 = arith.constant 0 : i32
    %c0_i32_1 = arith.constant 0 : i32
    return %arg0, %c0_i32, %c0_i32_0 : i32, i32, i32
  }
}

</mosaic_0001>

<llo_original>
// kernel: tpu_custom_call.1
$region0: #{tpu_custom_call.1}
  #allocation0 [shape = 'u32[]', space=smem, size = 0x4, offset = 0x4, fixed_abs, tag = 'smem constant byte address 0x4 - core index']
  #allocation1 [shape = 'u32[144,128]{1,0:T(1,128)}', space=vmem, size = 0x12000, scoped, tag = 'internal scratch']
  #allocation2 [shape = 'f32[1,18,32,128]{3,2,1,0:T(8,128)}', space=vmem, size = 0x48000, scoped, tag = 'scratch operand']
  #allocation3 [shape = 'bf16[64,1152]{1,0:T(16,128)(2,1)}', space=vmem, size = 0x24000, scoped, tag = 'scratch operand']
  %s0 = inlined_call_operand.hbm [shape: bf16[2,16,16,128], index: 0, kind: input, shape index: {}]
  %s1 = inlined_call_operand.hbm [shape: bf16[2,8,8,128], index: 1, kind: input, shape index: {}]
  %s2 = inlined_call_operand.hbm [shape: bf16[128,128], index: 2, kind: input, shape index: {}]
  %s3 = inlined_call_operand.hbm [shape: f32[1,128], index: 3, kind: input, shape index: {}]
  %s4 = inlined_call_operand.hbm [shape: bf16[1152,128], index: 4, kind: input, shape index: {}]
  %s5 = inlined_call_operand.hbm [shape: f32[1,128], index: 5, kind: input, shape index: {}]
  %s6 = inlined_call_operand.hbm [shape: bf16[256,128], index: 6, kind: input, shape index: {}]
  %s7 = inlined_call_operand.hbm [shape: f32[1,128], index: 7, kind: input, shape index: {}]
  %s8 = inlined_call_operand.hbm [shape: f32[2,64,128], index: 8, kind: output, shape index: {}]
  %s9 = sld [smem:[#allocation0]]
  $region97: #{tpu_custom_call.1} parent=0
    _
  %s11 = ssub.s32 1, %s9
  %s12 = scalar_select 0, %s11, %s9
  $region1: #{tpu_custom_call.1} parent=0
    #allocation4 [shape = 'u8[131072]{0}', space=vmem, size = 0x20000, scoped, tag = 'input window, operand 0']
    #allocation5 [shape = 's32[2]{0}', space=sflag, size = 0x8, scoped, tag = 'scoped memory for tpu_custom_call.1']
    #allocation6 [shape = 's32[2]{0}', space=sflag, size = 0x8, scoped, tag = 'scoped memory for tpu_custom_call.1']
    #allocation7 [shape = 'u8[32768]{0}', space=vmem, size = 0x8000, scoped, tag = 'input window, operand 1']
    #allocation8 [shape = 's32[2]{0}', space=sflag, size = 0x8, scoped, tag = 'scoped memory for tpu_custom_call.1']
    #allocation9 [shape = 'u8[32768]{0}', space=vmem, size = 0x8000, scoped, tag = 'input window, operand 2, single buffered']
    #allocation10 [shape = 'u8[512]{0}', space=vmem, size = 0x400, scoped, tag = 'input window, operand 3, single buffered']
    #allocation11 [shape = 's32[1]{0}', space=sflag, size = 0x4, scoped, tag = 'scoped memory for tpu_custom_call.1']
    #allocation12 [shape = 'u8[294912]{0}', space=vmem, size = 0x48000, scoped, tag = 'input window, operand 4, single buffered']
    #allocation13 [shape = 'u8[512]{0}', space=vmem, size = 0x400, scoped, tag = 'input window, operand 5, single buffered']
    #allocation14 [shape = 's32[1]{0}', space=sflag, size = 0x4, scoped, tag = 'scoped memory for tpu_custom_call.1']
    #allocation15 [shape = 'u8[65536]{0}', space=vmem, size = 0x10000, scoped, tag = 'input window, operand 6, single buffered']
    #allocation16 [shape = 'u8[512]{0}', space=vmem, size = 0x400, scoped, tag = 'input window, operand 7, single buffered']
    #allocation17 [shape = 's32[1]{0}', space=sflag, size = 0x4, scoped, tag = 'scoped memory for tpu_custom_call.1']
    #allocation18 [shape = 'u8[65536]{0}', space=vmem, size = 0x10000, scoped, tag = 'output window, operand 0']
    %13 = vsyncpa [#allocation5], 0
    %s14 = scalar_lea.sflag [#allocation5], 1
    %15 = vsyncpa %s14, 0
    %16 = vsyncpa [#allocation8], 0
    %s17 = scalar_lea.sflag [#allocation8], 1
    %18 = vsyncpa %s17, 0
    %19 = vsyncpa [#allocation11], 0
    %20 = vsyncpa [#allocation14], 0
    %21 = vsyncpa [#allocation17], 0
    %22 = vsyncpa [#allocation6], 0
    %s23 = scalar_lea.sflag [#allocation6], 1
    %24 = vsyncpa %s23, 0
    loop: start=0, step=1, limit=4
    $region2: #{tpu_custom_call.1} parent=1 // loop_pre_header
      _
    $region3: #{tpu_custom_call.1} parent=1 // loop_header
      %s26 = sphi 0, %s30
      %p27 = scmp.ge.s32.totalorder %s26, 4
      %s36 = sphi 0, %s38
      %s39 = sphi 0, %s36
      %s40 = sphi 0, %s39
      %s56 = sphi 0, %s40
      %s62 = sphi 0, %s64
      %s65 = sphi 0, %s62
      %s66 = sphi 0, %s65
      %s82 = sphi 0, %s66
      %s86 = sphi 0, %s86
      %s88 = sphi 0, %s86
      %s89 = sphi 0, %s88
      %s103 = sphi 0, %s89
      %s107 = sphi 0, %s107
      %s109 = sphi 0, %s107
      %s110 = sphi 0, %s109
      %s124 = sphi 0, %s110
      %s128 = sphi 0, %s128
      %s130 = sphi 0, %s128
      %s131 = sphi 0, %s130
      %s145 = sphi 0, %s131
      %s149 = sphi 0, %s149
      %s151 = sphi 0, %s149
      %s152 = sphi 0, %s151
      %s166 = sphi 0, %s152
      %s170 = sphi 0, %s170
      %s172 = sphi 0, %s170
      %s173 = sphi 0, %s172
      %s187 = sphi 0, %s173
      %s191 = sphi 0, %s191
      %s193 = sphi 0, %s191
      %s194 = sphi 0, %s193
      %s208 = sphi 0, %s194
      %s214 = sphi 0, %s216
      %s217 = sphi 0, %s214
      %s218 = sphi 0, %s217
      %s234 = sphi 0, %s218
    $region4: #{tpu_custom_call.1} parent=1 // loop_header_branch
      %29 = sbr.rel (%p27) target = $region8
    $region5: #{tpu_custom_call.1} parent=1 // loop_body
      %s31 = ssub.s32 %s26, 1
      %s32 = ssub.s32 %s26, 2
      %s33 = sadd.s32 %s26, 1
      %s34 = ssub.s32 %s26, %s33
      %p35 = scmp.eq.s32.totalorder %s34, 0
      %s37 = sadd.s32 %s36, 1
      %s38 = scalar_select %p35, %s36, %s37
      %p41 = pneg %p35
      %p42 = scmp.eq.s32.totalorder %s26, 1
      %p43 = por %p41, %p42
      %p44 = scmp.ne.s32.totalorder %s36, %s39
      %p45 = scmp.eq.s32.totalorder %s26, 0
      %p46 = por %p44, %p45
      %p47 = scmp.ne.s32.totalorder %s36, %s39
      %p48 = scmp.eq.s32.totalorder %s31, 1
      %p49 = por %p47, %p48
      %p50 = scmp.ne.s32.totalorder %s39, %s40
      %p51 = scmp.eq.s32.totalorder %s31, 0
      %p52 = por %p50, %p51
      %p53 = scmp.ne.s32.totalorder %s39, %s40
      %p54 = scmp.eq.s32.totalorder %s32, 1
      %p55 = por %p53, %p54
      %p57 = scmp.ne.s32.totalorder %s40, %s56
      %p58 = scmp.eq.s32.totalorder %s32, 0
      %p59 = por %p57, %p58
      %s60 = ssub.s32 %s26, %s33
      %p61 = scmp.eq.s32.totalorder %s60, 0
      %s63 = sadd.s32 %s62, 1
      %s64 = scalar_select %p61, %s62, %s63
      %p67 = pneg %p61
      %p68 = scmp.eq.s32.totalorder %s26, 1
      %p69 = por %p67, %p68
      %p70 = scmp.ne.s32.totalorder %s62, %s65
      %p71 = scmp.eq.s32.totalorder %s26, 0
      %p72 = por %p70, %p71
      %p73 = scmp.ne.s32.totalorder %s62, %s65
      %p74 = scmp.eq.s32.totalorder %s31, 1
      %p75 = por %p73, %p74
      %p76 = scmp.ne.s32.totalorder %s65, %s66
      %p77 = scmp.eq.s32.totalorder %s31, 0
      %p78 = por %p76, %p77
      %p79 = scmp.ne.s32.totalorder %s65, %s66
      %p80 = scmp.eq.s32.totalorder %s32, 1
      %p81 = por %p79, %p80
      %p83 = scmp.ne.s32.totalorder %s66, %s82
      %p84 = scmp.eq.s32.totalorder %s32, 0
      %p85 = por %p83, %p84
      %s87 = sadd.s32 %s86, 1
      %p90 = scmp.eq.s32.totalorder %s26, 1
      %p91 = scmp.ne.s32.totalorder %s86, %s88
      %p92 = scmp.eq.s32.totalorder %s26, 0
      %p93 = por %p91, %p92
      %p94 = scmp.ne.s32.totalorder %s86, %s88
      %p95 = scmp.eq.s32.totalorder %s31, 1
      %p96 = por %p94, %p95
      %p97 = scmp.ne.s32.totalorder %s88, %s89
      %p98 = scmp.eq.s32.totalorder %s31, 0
      %p99 = por %p97, %p98
      %p100 = scmp.ne.s32.totalorder %s88, %s89
      %p101 = scmp.eq.s32.totalorder %s32, 1
      %p102 = por %p100, %p101
      %p104 = scmp.ne.s32.totalorder %s89, %s103
      %p105 = scmp.eq.s32.totalorder %s32, 0
      %p106 = por %p104, %p105
      %s108 = sadd.s32 %s107, 1
      %p111 = scmp.eq.s32.totalorder %s26, 1
      %p112 = scmp.ne.s32.totalorder %s107, %s109
      %p113 = scmp.eq.s32.totalorder %s26, 0
      %p114 = por %p112, %p113
      %p115 = scmp.ne.s32.totalorder %s107, %s109
      %p116 = scmp.eq.s32.totalorder %s31, 1
      %p117 = por %p115, %p116
      %p118 = scmp.ne.s32.totalorder %s109, %s110
      %p119 = scmp.eq.s32.totalorder %s31, 0
      %p120 = por %p118, %p119
      %p121 = scmp.ne.s32.totalorder %s109, %s110
      %p122 = scmp.eq.s32.totalorder %s32, 1
      %p123 = por %p121, %p122
      %p125 = scmp.ne.s32.totalorder %s110, %s124
      %p126 = scmp.eq.s32.totalorder %s32, 0
      %p127 = por %p125, %p126
      %s129 = sadd.s32 %s128, 1
      %p132 = scmp.eq.s32.totalorder %s26, 1
      %p133 = scmp.ne.s32.totalorder %s128, %s130
      %p134 = scmp.eq.s32.totalorder %s26, 0
      %p135 = por %p133, %p134
      %p136 = scmp.ne.s32.totalorder %s128, %s130
      %p137 = scmp.eq.s32.totalorder %s31, 1
      %p138 = por %p136, %p137
      %p139 = scmp.ne.s32.totalorder %s130, %s131
      %p140 = scmp.eq.s32.totalorder %s31, 0
      %p141 = por %p139, %p140
      %p142 = scmp.ne.s32.totalorder %s130, %s131
      %p143 = scmp.eq.s32.totalorder %s32, 1
      %p144 = por %p142, %p143
      %p146 = scmp.ne.s32.totalorder %s131, %s145
      %p147 = scmp.eq.s32.totalorder %s32, 0
      %p148 = por %p146, %p147
      %s150 = sadd.s32 %s149, 1
      %p153 = scmp.eq.s32.totalorder %s26, 1
      %p154 = scmp.ne.s32.totalorder %s149, %s151
      %p155 = scmp.eq.s32.totalorder %s26, 0
      %p156 = por %p154, %p155
      %p157 = scmp.ne.s32.totalorder %s149, %s151
      %p158 = scmp.eq.s32.totalorder %s31, 1
      %p159 = por %p157, %p158
      %p160 = scmp.ne.s32.totalorder %s151, %s152
      %p161 = scmp.eq.s32.totalorder %s31, 0
      %p162 = por %p160, %p161
      %p163 = scmp.ne.s32.totalorder %s151, %s152
      %p164 = scmp.eq.s32.totalorder %s32, 1
      %p165 = por %p163, %p164
      %p167 = scmp.ne.s32.totalorder %s152, %s166
      %p168 = scmp.eq.s32.totalorder %s32, 0
      %p169 = por %p167, %p168
      %s171 = sadd.s32 %s170, 1
      %p174 = scmp.eq.s32.totalorder %s26, 1
      %p175 = scmp.ne.s32.totalorder %s170, %s172
      %p176 = scmp.eq.s32.totalorder %s26, 0
      %p177 = por %p175, %p176
      %p178 = scmp.ne.s32.totalorder %s170, %s172
      %p179 = scmp.eq.s32.totalorder %s31, 1
      %p180 = por %p178, %p179
      %p181 = scmp.ne.s32.totalorder %s172, %s173
      %p182 = scmp.eq.s32.totalorder %s31, 0
      %p183 = por %p181, %p182
      %p184 = scmp.ne.s32.totalorder %s172, %s173
      %p185 = scmp.eq.s32.totalorder %s32, 1
      %p186 = por %p184, %p185
      %p188 = scmp.ne.s32.totalorder %s173, %s187
      %p189 = scmp.eq.s32.totalorder %s32, 0
      %p190 = por %p188, %p189
      %s192 = sadd.s32 %s191, 1
      %p195 = scmp.eq.s32.totalorder %s26, 1
      %p196 = scmp.ne.s32.totalorder %s191, %s193
      %p197 = scmp.eq.s32.totalorder %s26, 0
      %p198 = por %p196, %p197
      %p199 = scmp.ne.s32.totalorder %s191, %s193
      %p200 = scmp.eq.s32.totalorder %s31, 1
      %p201 = por %p199, %p200
      %p202 = scmp.ne.s32.totalorder %s193, %s194
      %p203 = scmp.eq.s32.totalorder %s31, 0
      %p204 = por %p202, %p203
      %p205 = scmp.ne.s32.totalorder %s193, %s194
      %p206 = scmp.eq.s32.totalorder %s32, 1
      %p207 = por %p205, %p206
      %p209 = scmp.ne.s32.totalorder %s194, %s208
      %p210 = scmp.eq.s32.totalorder %s32, 0
      %p211 = por %p209, %p210
      %s212 = ssub.s32 %s26, %s33
      %p213 = scmp.eq.s32.totalorder %s212, 0
      %s215 = sadd.s32 %s214, 1
      %s216 = scalar_select %p213, %s214, %s215
      %p219 = pneg %p213
      %p220 = scmp.eq.s32.totalorder %s26, 1
      %p221 = por %p219, %p220
      %p222 = scmp.ne.s32.totalorder %s214, %s217
      %p223 = scmp.eq.s32.totalorder %s26, 0
      %p224 = por %p222, %p223
      %p225 = scmp.ne.s32.totalorder %s214, %s217
      %p226 = scmp.eq.s32.totalorder %s31, 1
      %p227 = por %p225, %p226
      %p228 = scmp.ne.s32.totalorder %s217, %s218
      %p229 = scmp.eq.s32.totalorder %s31, 0
      %p230 = por %p228, %p229
      %p231 = scmp.ne.s32.totalorder %s217, %s218
      %p232 = scmp.eq.s32.totalorder %s32, 1
      %p233 = por %p231, %p232
      %p235 = scmp.ne.s32.totalorder %s218, %s234
      %p236 = scmp.eq.s32.totalorder %s32, 0
      %p237 = por %p235, %p236
      %p238 = scmp.le.s32.totalorder 1, %s26
      %p239 = scmp.lt.s32.totalorder %s26, 3
      %p240 = pnand %p238, %p239
      %p241 = pneg %p240
      // Predicated region
      $region9: #{tpu_custom_call.1} parent=5 // pred_check
        _
      $region10: #{tpu_custom_call.1} parent=5 // pred_check_branch
        %243 = sbr.rel (%p240) target = $region12
      $region11: #{tpu_custom_call.1} parent=5 // pred_region
        %s244 = ssub.s32 %s26, 1
        // Predicated region
        $region13: #{tpu_custom_call.1} parent=11 // pred_check
          %p245 = pneg %p99
        $region14: #{tpu_custom_call.1} parent=11 // pred_check_branch
          %247 = sbr.rel (%p245) target = $region16
        $region15: #{tpu_custom_call.1} parent=11 // pred_region
          %s249 = ssub.s32 1024, 1024
          %250 = vsyncadd [#allocation8], %s249
          %s251 = sshll.u32 [#allocation9], 4
          %s252 = int_to_ptr.vmem [resolvable:$true] %s251
          %257 = dma.hbm_to_vmem [thread:$0]  %s2, 1024, %s252, [#allocation8], 64, 64, 4
        $region16: #{tpu_custom_call.1} parent=11 // pred_fallthru
          _
        // Predicated region
        $region17: #{tpu_custom_call.1} parent=11 // pred_check
          %p258 = pneg %p120
        $region18: #{tpu_custom_call.1} parent=11 // pred_check_branch
          %260 = sbr.rel (%p258) target = $region20
        $region19: #{tpu_custom_call.1} parent=11 // pred_region
          %s262 = ssub.s32 16, 16
          %263 = vsyncadd [#allocation11], %s262
          %s265 = sshll.u32 [#allocation10], 4
          %s266 = int_to_ptr.vmem [resolvable:$true] %s265
          %268 = dma.hbm_to_vmem [thread:$0]  %s3, 16, %s266, [#allocation11]
        $region20: #{tpu_custom_call.1} parent=11 // pred_fallthru
          _
        // Predicated region
        $region21: #{tpu_custom_call.1} parent=11 // pred_check
          %p269 = pneg %p141
        $region22: #{tpu_custom_call.1} parent=11 // pred_check_branch
          %271 = sbr.rel (%p269) target = $region24
        $region23: #{tpu_custom_call.1} parent=11 // pred_region
          %s273 = ssub.s32 9216, 9216
          %274 = vsyncadd [#allocation11], %s273
          %s275 = sshll.u32 [#allocation12], 4
          %s276 = int_to_ptr.vmem [resolvable:$true] %s275
          %281 = dma.hbm_to_vmem [thread:$0]  %s4, 9216, %s276, [#allocation11], 64, 64, 4
        $region24: #{tpu_custom_call.1} parent=11 // pred_fallthru
          _
        // Predicated region
        $region25: #{tpu_custom_call.1} parent=11 // pred_check
          %p282 = pneg %p162
        $region26: #{tpu_custom_call.1} parent=11 // pred_check_branch
          %284 = sbr.rel (%p282) target = $region28
        $region27: #{tpu_custom_call.1} parent=11 // pred_region
          %s286 = ssub.s32 16, 16
          %287 = vsyncadd [#allocation14], %s286
          %s289 = sshll.u32 [#allocation13], 4
          %s290 = int_to_ptr.vmem [resolvable:$true] %s289
          %292 = dma.hbm_to_vmem [thread:$0]  %s5, 16, %s290, [#allocation14]
        $region28: #{tpu_custom_call.1} parent=11 // pred_fallthru
          _
        // Predicated region
        $region29: #{tpu_custom_call.1} parent=11 // pred_check
          %p293 = pneg %p183
        $region30: #{tpu_custom_call.1} parent=11 // pred_check_branch
          %295 = sbr.rel (%p293) target = $region32
        $region31: #{tpu_custom_call.1} parent=11 // pred_region
          %s297 = ssub.s32 2048, 2048
          %298 = vsyncadd [#allocation14], %s297
          %s299 = sshll.u32 [#allocation15], 4
          %s300 = int_to_ptr.vmem [resolvable:$true] %s299
          %305 = dma.hbm_to_vmem [thread:$0]  %s6, 2048, %s300, [#allocation14], 64, 64, 4
        $region32: #{tpu_custom_call.1} parent=11 // pred_fallthru
          _
        // Predicated region
        $region33: #{tpu_custom_call.1} parent=11 // pred_check
          %p306 = pneg %p204
        $region34: #{tpu_custom_call.1} parent=11 // pred_check_branch
          %308 = sbr.rel (%p306) target = $region36
        $region35: #{tpu_custom_call.1} parent=11 // pred_region
          %s310 = ssub.s32 16, 16
          %311 = vsyncadd [#allocation17], %s310
          %s313 = sshll.u32 [#allocation16], 4
          %s314 = int_to_ptr.vmem [resolvable:$true] %s313
          %316 = dma.hbm_to_vmem [thread:$0]  %s7, 16, %s314, [#allocation17]
        $region36: #{tpu_custom_call.1} parent=11 // pred_fallthru
          _
      $region12: #{tpu_custom_call.1} parent=5 // pred_fallthru
        _
      %p317 = scmp.lt.s32.totalorder %s26, 2
      // Predicated region
      $region37: #{tpu_custom_call.1} parent=5 // pred_check
        %p318 = pneg %p317
      $region38: #{tpu_custom_call.1} parent=5 // pred_check_branch
        %320 = sbr.rel (%p318) target = $region40
      $region39: #{tpu_custom_call.1} parent=5 // pred_region
        // Predicated region
        $region41: #{tpu_custom_call.1} parent=39 // pred_check
          %p321 = pneg %p46
        $region42: #{tpu_custom_call.1} parent=39 // pred_check_branch
          %323 = sbr.rel (%p321) target = $region44
        $region43: #{tpu_custom_call.1} parent=39 // pred_region
          %s324 = sand.u32 %s36, 1
          %s325 = scalar_lea.sflag [#allocation5], %s324
          %s326 = sand.u32 %s36, 1
          %s327 = smul.addr %s326, 128
          %s328 = scalar_lea.vmem [#allocation4], %s327
          %s330 = ssub.s32 2048, 2048
          %331 = vsyncadd %s325, %s330
          %s332 = smul.addr %s26, 32
          %s333 = smul.addr %s332, 64
          %s334 = scalar_lea.hbm %s0, %s333
          %s335 = sshll.u32 %s328, 4
          %s336 = int_to_ptr.vmem [resolvable:$true] %s335
          %341 = dma.hbm_to_vmem [thread:$0]  %s334, 2048, %s336, %s325, 64, 64, 4
        $region44: #{tpu_custom_call.1} parent=39 // pred_fallthru
          _
        // Predicated region
        $region45: #{tpu_custom_call.1} parent=39 // pred_check
          %p342 = pneg %p72
        $region46: #{tpu_custom_call.1} parent=39 // pred_check_branch
          %344 = sbr.rel (%p342) target = $region48
        $region47: #{tpu_custom_call.1} parent=39 // pred_region
          %s345 = sand.u32 %s26, 1
          %s346 = scalar_lea.sflag [#allocation8], %s345
          %s347 = sand.u32 %s62, 1
          %s348 = smul.addr %s347, 32
          %s349 = scalar_lea.vmem [#allocation7], %s348
          %s351 = ssub.s32 512, 512
          %352 = vsyncadd %s346, %s351
          %s353 = smul.addr %s26, 8
          %s354 = smul.addr %s353, 64
          %s355 = scalar_lea.hbm %s1, %s354
          %s356 = sshll.u32 %s349, 4
          %s357 = int_to_ptr.vmem [resolvable:$true] %s356
          %362 = dma.hbm_to_vmem [thread:$0]  %s355, 512, %s357, %s346, 64, 64, 4
        $region48: #{tpu_custom_call.1} parent=39 // pred_fallthru
          _
      $region40: #{tpu_custom_call.1} parent=5 // pred_fallthru
        _
      %p363 = scmp.le.s32.totalorder 1, %s26
      %p364 = scmp.lt.s32.totalorder %s26, 3
      %p365 = pnand %p363, %p364
      %p366 = pneg %p365
      // Predicated region
      $region49: #{tpu_custom_call.1} parent=5 // pred_check
        _
      $region50: #{tpu_custom_call.1} parent=5 // pred_check_branch
        %368 = sbr.rel (%p365) target = $region52
      $region51: #{tpu_custom_call.1} parent=5 // pred_region
        %s369 = ssub.s32 %s26, 1
        %s370 = sand.u32 %s39, 1
        %s371 = scalar_lea.sflag [#allocation5], %s370
        %s372 = sand.u32 %s39, 1
        %s373 = smul.addr %s372, 128
        %s374 = scalar_lea.vmem [#allocation4], %s373
        // Predicated region
        $region53: #{tpu_custom_call.1} parent=51 // pred_check
          %p375 = pneg %p52
        $region54: #{tpu_custom_call.1} parent=51 // pred_check_branch
          %377 = sbr.rel (%p375) target = $region56
        $region55: #{tpu_custom_call.1} parent=51 // pred_region
          %378 = dma.done %s371, 2048
        $region56: #{tpu_custom_call.1} parent=51 // pred_fallthru
          _
        %s379 = sand.u32 %s31, 1
        %s380 = scalar_lea.sflag [#allocation8], %s379
        %s381 = sand.u32 %s65, 1
        %s382 = smul.addr %s381, 32
        %s383 = scalar_lea.vmem [#allocation7], %s382
        // Predicated region
        $region57: #{tpu_custom_call.1} parent=51 // pred_check
          %p384 = pneg %p78
        $region58: #{tpu_custom_call.1} parent=51 // pred_check_branch
          %386 = sbr.rel (%p384) target = $region60
        $region59: #{tpu_custom_call.1} parent=51 // pred_region
          %387 = dma.done %s380, 512
        $region60: #{tpu_custom_call.1} parent=51 // pred_fallthru
          _
        // Predicated region
        $region61: #{tpu_custom_call.1} parent=51 // pred_check
          %p388 = pneg %p99
        $region62: #{tpu_custom_call.1} parent=51 // pred_check_branch
          %390 = sbr.rel (%p388) target = $region64
        $region63: #{tpu_custom_call.1} parent=51 // pred_region
          %391 = dma.done [#allocation8], 1024
        $region64: #{tpu_custom_call.1} parent=51 // pred_fallthru
          _
        // Predicated region
        $region65: #{tpu_custom_call.1} parent=51 // pred_check
          %p392 = pneg %p120
        $region66: #{tpu_custom_call.1} parent=51 // pred_check_branch
          %394 = sbr.rel (%p392) target = $region68
        $region67: #{tpu_custom_call.1} parent=51 // pred_region
          %395 = dma.done [#allocation11], 16
        $region68: #{tpu_custom_call.1} parent=51 // pred_fallthru
          _
        // Predicated region
        $region69: #{tpu_custom_call.1} parent=51 // pred_check
          %p396 = pneg %p141
        $region70: #{tpu_custom_call.1} parent=51 // pred_check_branch
          %398 = sbr.rel (%p396) target = $region72
        $region71: #{tpu_custom_call.1} parent=51 // pred_region
          %399 = dma.done [#allocation11], 9216
        $region72: #{tpu_custom_call.1} parent=51 // pred_fallthru
          _
        // Predicated region
        $region73: #{tpu_custom_call.1} parent=51 // pred_check
          %p400 = pneg %p162
        $region74: #{tpu_custom_call.1} parent=51 // pred_check_branch
          %402 = sbr.rel (%p400) target = $region76
        $region75: #{tpu_custom_call.1} parent=51 // pred_region
          %403 = dma.done [#allocation14], 16
        $region76: #{tpu_custom_call.1} parent=51 // pred_fallthru
          _
        // Predicated region
        $region77: #{tpu_custom_call.1} parent=51 // pred_check
          %p404 = pneg %p183
        $region78: #{tpu_custom_call.1} parent=51 // pred_check_branch
          %406 = sbr.rel (%p404) target = $region80
        $region79: #{tpu_custom_call.1} parent=51 // pred_region
          %407 = dma.done [#allocation14], 2048
        $region80: #{tpu_custom_call.1} parent=51 // pred_fallthru
          _
        // Predicated region
        $region81: #{tpu_custom_call.1} parent=51 // pred_check
          %p408 = pneg %p204
        $region82: #{tpu_custom_call.1} parent=51 // pred_check_branch
          %410 = sbr.rel (%p408) target = $region84
        $region83: #{tpu_custom_call.1} parent=51 // pred_region
          %411 = dma.done [#allocation17], 16
        $region84: #{tpu_custom_call.1} parent=51 // pred_fallthru
          _
        %s412 = sand.u32 %s39, 1
        %s413 = scalar_lea.sflag [#allocation5], %s412
        %s414 = sand.u32 %s39, 1
        %s415 = smul.addr %s414, 128
        %s416 = scalar_lea.vmem [#allocation4], %s415
        %p417 = pneg %p52
        %p418 = pneg %p49
        %s419 = sand.u32 %s31, 1
        %s420 = scalar_lea.sflag [#allocation8], %s419
        %s421 = sand.u32 %s65, 1
        %s422 = smul.addr %s421, 32
        %s423 = scalar_lea.vmem [#allocation7], %s422
        %p424 = pneg %p78
        %p425 = pneg %p75
        %p426 = pneg %p99
        %p427 = pneg %p96
        %p428 = pneg %p120
        %p429 = pneg %p117
        %p430 = pneg %p141
        %p431 = pneg %p138
        %p432 = pneg %p162
        %p433 = pneg %p159
        %p434 = pneg %p183
        %p435 = pneg %p180
        %p436 = pneg %p204
        %p437 = pneg %p201
        %p438 = pneg %p230
        %p439 = pneg %p227
        %s440 = sand.u32 %s217, 1
        %s441 = scalar_lea.sflag [#allocation6], %s440
        %s442 = sand.u32 %s217, 1
        %s443 = smul.addr %s442, 64
        %s444 = scalar_lea.vmem [#allocation18], %s443
        %v446 = vld [vmem:[%s374] sm:$0xf]
        %v447 = vld [vmem:[%s374 + $0x4] sm:$0xf]
        %v448 = vld [vmem:[%s374 + $0x8] sm:$0xf]
        %v449 = vld [vmem:[%s374 + $0xc] sm:$0xf]
        %v450 = vld [vmem:[%s374 + $0x10] sm:$0xf]
        %v451 = vld [vmem:[%s374 + $0x14] sm:$0xf]
        %v452 = vld [vmem:[%s374 + $0x18] sm:$0xf]
        %v453 = vld [vmem:[%s374 + $0x1c] sm:$0xf]
        %v454 = vld [vmem:[%s374 + $0x20] sm:$0xf]
        %v455 = vld [vmem:[%s374 + $0x24] sm:$0xf]
        %v456 = vld [vmem:[%s374 + $0x28] sm:$0xf]
        %v457 = vld [vmem:[%s374 + $0x2c] sm:$0xf]
        %v458 = vld [vmem:[%s374 + $0x30] sm:$0xf]
        %v459 = vld [vmem:[%s374 + $0x34] sm:$0xf]
        %v460 = vld [vmem:[%s374 + $0x38] sm:$0xf]
        %v461 = vld [vmem:[%s374 + $0x3c] sm:$0xf]
        %v462 = vld [vmem:[%s374 + $0x40] sm:$0xf]
        %v463 = vld [vmem:[%s374 + $0x44] sm:$0xf]
        %v464 = vld [vmem:[%s374 + $0x48] sm:$0xf]
        %v465 = vld [vmem:[%s374 + $0x4c] sm:$0xf]
        %v466 = vld [vmem:[%s374 + $0x50] sm:$0xf]
        %v467 = vld [vmem:[%s374 + $0x54] sm:$0xf]
        %v468 = vld [vmem:[%s374 + $0x58] sm:$0xf]
        %v469 = vld [vmem:[%s374 + $0x5c] sm:$0xf]
        %v470 = vld [vmem:[%s374 + $0x60] sm:$0xf]
        %v471 = vld [vmem:[%s374 + $0x64] sm:$0xf]
        %v472 = vld [vmem:[%s374 + $0x68] sm:$0xf]
        %v473 = vld [vmem:[%s374 + $0x6c] sm:$0xf]
        %v474 = vld [vmem:[%s374 + $0x70] sm:$0xf]
        %v475 = vld [vmem:[%s374 + $0x74] sm:$0xf]
        %v476 = vld [vmem:[%s374 + $0x78] sm:$0xf]
        %v477 = vld [vmem:[%s374 + $0x7c] sm:$0xf]
        %v478 = vld [vmem:[#allocation9] sm:$0xf]
        %v479 = vld [vmem:[#allocation9 + $0x4] sm:$0xf]
        %v480 = vld [vmem:[#allocation9 + $0x8] sm:$0xf]
        %v481 = vld [vmem:[#allocation9 + $0xc] sm:$0xf]
        %v482 = vld [vmem:[#allocation9 + $0x10] sm:$0xf]
        %v483 = vld [vmem:[#allocation9 + $0x14] sm:$0xf]
        %v484 = vld [vmem:[#allocation9 + $0x18] sm:$0xf]
        %v485 = vld [vmem:[#allocation9 + $0x1c] sm:$0xf]
        %v486 = vld [vmem:[#allocation9 + $0x20] sm:$0xf]
        %v487 = vld [vmem:[#allocation9 + $0x24] sm:$0xf]
        %v488 = vld [vmem:[#allocation9 + $0x28] sm:$0xf]
        %v489 = vld [vmem:[#allocation9 + $0x2c] sm:$0xf]
        %v490 = vld [vmem:[#allocation9 + $0x30] sm:$0xf]
        %v491 = vld [vmem:[#allocation9 + $0x34] sm:$0xf]
        %v492 = vld [vmem:[#allocation9 + $0x38] sm:$0xf]
        %v493 = vld [vmem:[#allocation9 + $0x3c] sm:$0xf]
        %v494 = vld [vmem:[#allocation10] sm:$0x1]
        %v496 = vlaneseq
        %v497 = vshrl.u32 %v496, 7
        %v498 = vsub.s32 0, %v497
        %v499 = vrot.slane %v494, %v498
        %v533 = vunpack.c.l.b16 %v446
        %v534 = vunpack.c.l.b16 %v447
        %v535 = vunpack.c.l.b16 %v448
        %v536 = vunpack.c.l.b16 %v449
        %v537 = vunpack.c.l.b16 %v450
        %v538 = vunpack.c.l.b16 %v451
        %v539 = vunpack.c.l.b16 %v452
        %v540 = vunpack.c.l.b16 %v453
        %v541 = vunpack.c.l.b16 %v454
        %v542 = vunpack.c.l.b16 %v455
        %v543 = vunpack.c.l.b16 %v456
        %v544 = vunpack.c.l.b16 %v457
        %v545 = vunpack.c.l.b16 %v458
        %v546 = vunpack.c.l.b16 %v459
        %v547 = vunpack.c.l.b16 %v460
        %v548 = vunpack.c.l.b16 %v461
        %v549 = vunpack.c.l.b16 %v462
        %v550 = vunpack.c.l.b16 %v463
        %v551 = vunpack.c.l.b16 %v464
        %v552 = vunpack.c.l.b16 %v465
        %v553 = vunpack.c.l.b16 %v466
        %v554 = vunpack.c.l.b16 %v467
        %v555 = vunpack.c.l.b16 %v468
        %v556 = vunpack.c.l.b16 %v469
        %v557 = vunpack.c.l.b16 %v470
        %v558 = vunpack.c.l.b16 %v471
        %v559 = vunpack.c.l.b16 %v472
        %v560 = vunpack.c.l.b16 %v473
        %v561 = vunpack.c.l.b16 %v474
        %v562 = vunpack.c.l.b16 %v475
        %v563 = vunpack.c.l.b16 %v476
        %v564 = vunpack.c.l.b16 %v477
        %v565 = vpack.c.b16 %v534, %v533
        %v566 = vpack.c.b16 %v536, %v535
        %v567 = vpack.c.b16 %v538, %v537
        %v568 = vpack.c.b16 %v540, %v539
        %v569 = vpack.c.b16 %v542, %v541
        %v570 = vpack.c.b16 %v544, %v543
        %v571 = vpack.c.b16 %v546, %v545
        %v572 = vpack.c.b16 %v548, %v547
        %v573 = vpack.c.b16 %v550, %v549
        %v574 = vpack.c.b16 %v552, %v551
        %v575 = vpack.c.b16 %v554, %v553
        %v576 = vpack.c.b16 %v556, %v555
        %v577 = vpack.c.b16 %v558, %v557
        %v578 = vpack.c.b16 %v560, %v559
        %v579 = vpack.c.b16 %v562, %v561
        %v580 = vpack.c.b16 %v564, %v563
        %v613 = vunpack.c.l.b16 %v478
        %v614 = vunpack.c.l.b16 %v479
        %v615 = vunpack.c.l.b16 %v480
        %v616 = vunpack.c.l.b16 %v481
        %v617 = vunpack.c.l.b16 %v482
        %v618 = vunpack.c.l.b16 %v483
        %v619 = vunpack.c.l.b16 %v484
        %v620 = vunpack.c.l.b16 %v485
        %v621 = vunpack.c.l.b16 %v486
        %v622 = vunpack.c.l.b16 %v487
        %v623 = vunpack.c.l.b16 %v488
        %v624 = vunpack.c.l.b16 %v489
        %v625 = vunpack.c.l.b16 %v490
        %v626 = vunpack.c.l.b16 %v491
        %v627 = vunpack.c.l.b16 %v492
        %v628 = vunpack.c.l.b16 %v493
        %v629 = vpack.c.b16 %v614, %v613
        %v630 = vpack.c.b16 %v616, %v615
        %v631 = vpack.c.b16 %v618, %v617
        %v632 = vpack.c.b16 %v620, %v619
        %v633 = vpack.c.b16 %v622, %v621
        %v634 = vpack.c.b16 %v624, %v623
        %v635 = vpack.c.b16 %v626, %v625
        %v636 = vpack.c.b16 %v628, %v627
        %645 = vmatprep.subr.bf16.mxu0 0
        %646 = vmatpush1.bf16.msra.mxu0 %v629
        %647 = vmatprep.subr.bf16.mxu0 0
        %648 = vmatpush1.bf16.msra.mxu0 %v630
        %649 = vmatprep.subr.bf16.mxu0 0
        %650 = vmatpush1.bf16.msra.mxu0 %v631
        %651 = vmatprep.subr.bf16.mxu0 0
        %652 = vmatpush1.bf16.msra.mxu0 %v632
        %653 = vmatprep.subr.bf16.mxu0 0
        %654 = vmatpush1.bf16.msra.mxu0 %v633
        %655 = vmatprep.subr.bf16.mxu0 0
        %656 = vmatpush1.bf16.msra.mxu0 %v634
        %657 = vmatprep.subr.bf16.mxu0 0
        %658 = vmatpush1.bf16.msra.mxu0 %v635
        %659 = vmatprep.subr.bf16.mxu0 0
        %660 = vmatpush1.bf16.msra.mxu0 %v636
        %661 = vmatprep.subr.bf16.mxu0 0
        %662 = vmatpush1.bf16.msra.mxu0 0
        %663 = vmatprep.subr.bf16.mxu0 0
        %664 = vmatpush1.bf16.msra.mxu0 0
        %665 = vmatprep.subr.bf16.mxu0 0
        %666 = vmatpush1.bf16.msra.mxu0 0
        %667 = vmatprep.subr.bf16.mxu0 0
        %668 = vmatpush1.bf16.msra.mxu0 0
        %669 = vmatprep.subr.bf16.mxu0 0
        %670 = vmatpush1.bf16.msra.mxu0 0
        %671 = vmatprep.subr.bf16.mxu0 0
        %672 = vmatpush1.bf16.msra.mxu0 0
        %673 = vmatprep.subr.bf16.mxu0 0
        %674 = vmatpush1.bf16.msra.mxu0 0
        %675 = vmatprep.subr.bf16.mxu0 0
        %676 = vmatpush1.bf16.msra.mxu0 0
        %677 = vmatprep.mubr.bf16.mxu0 0
        %678 = vmatmul.mubr.bf16.gmra.mrb[0].mxu0 %v565
        %v679 = vpop.f32.mrb[0].mxu0
        %v680 = vadd.f32 %v499, %v679
        %v681 = vpop.f32.mrb[0].mxu0
        %v682 = vpop.f32.mrb[0].mxu0
        %v683 = vadd.f32 %v499, %v682
        %v684 = vpop.f32.mrb[0].mxu0
        %685 = vmatprep.mubr.bf16.mxu0 0
        %686 = vmatmul.mubr.bf16.gmra.mrb[0].mxu0 %v566
        %v687 = vpop.f32.mrb[0].mxu0
        %v688 = vadd.f32 %v499, %v687
        %v689 = vpop.f32.mrb[0].mxu0
        %v690 = vpop.f32.mrb[0].mxu0
        %v691 = vadd.f32 %v499, %v690
        %v692 = vpop.f32.mrb[0].mxu0
        %693 = vmatprep.mubr.bf16.mxu0 0
        %694 = vmatmul.mubr.bf16.gmra.mrb[0].mxu0 %v567
        %v695 = vpop.f32.mrb[0].mxu0
        %v696 = vadd.f32 %v499, %v695
        %v697 = vpop.f32.mrb[0].mxu0
        %v698 = vpop.f32.mrb[0].mxu0
        %v699 = vadd.f32 %v499, %v698
        %v700 = vpop.f32.mrb[0].mxu0
        %701 = vmatprep.mubr.bf16.mxu0 0
        %702 = vmatmul.mubr.bf16.gmra.mrb[0].mxu0 %v568
        %v703 = vpop.f32.mrb[0].mxu0
        %v704 = vadd.f32 %v499, %v703
        %v705 = vpop.f32.mrb[0].mxu0
        %v706 = vpop.f32.mrb[0].mxu0
        %v707 = vadd.f32 %v499, %v706
        %v708 = vpop.f32.mrb[0].mxu0
        %709 = vmatprep.mubr.bf16.mxu0 0
        %710 = vmatmul.mubr.bf16.gmra.mrb[0].mxu0 %v569
        %v711 = vpop.f32.mrb[0].mxu0
        %v712 = vadd.f32 %v499, %v711
        %v713 = vpop.f32.mrb[0].mxu0
        %v714 = vpop.f32.mrb[0].mxu0
        %v715 = vadd.f32 %v499, %v714
        %v716 = vpop.f32.mrb[0].mxu0
        %717 = vmatprep.mubr.bf16.mxu0 0
        %718 = vmatmul.mubr.bf16.gmra.mrb[0].mxu0 %v570
        %v719 = vpop.f32.mrb[0].mxu0
        %v720 = vadd.f32 %v499, %v719
        %v721 = vpop.f32.mrb[0].mxu0
        %v722 = vpop.f32.mrb[0].mxu0
        %v723 = vadd.f32 %v499, %v722
        %v724 = vpop.f32.mrb[0].mxu0
        %725 = vmatprep.mubr.bf16.mxu0 0
        %726 = vmatmul.mubr.bf16.gmra.mrb[0].mxu0 %v571
        %v727 = vpop.f32.mrb[0].mxu0
        %v728 = vadd.f32 %v499, %v727
        %v729 = vpop.f32.mrb[0].mxu0
        %v730 = vpop.f32.mrb[0].mxu0
        %v731 = vadd.f32 %v499, %v730
        %v732 = vpop.f32.mrb[0].mxu0
        %733 = vmatprep.mubr.bf16.mxu0 0
        %734 = vmatmul.mubr.bf16.gmra.mrb[0].mxu0 %v572
        %v735 = vpop.f32.mrb[0].mxu0
        %v736 = vadd.f32 %v499, %v735
        %v737 = vpop.f32.mrb[0].mxu0
        %v738 = vpop.f32.mrb[0].mxu0
        %v739 = vadd.f32 %v499, %v738
        %v740 = vpop.f32.mrb[0].mxu0
        %741 = vmatprep.mubr.bf16.mxu0 0
        %742 = vmatmul.mubr.bf16.gmra.mrb[0].mxu0 %v573
        %v743 = vpop.f32.mrb[0].mxu0
        %v744 = vadd.f32 %v499, %v743
        %v745 = vpop.f32.mrb[0].mxu0
        %v746 = vpop.f32.mrb[0].mxu0
        %v747 = vadd.f32 %v499, %v746
        %v748 = vpop.f32.mrb[0].mxu0
        %749 = vmatprep.mubr.bf16.mxu0 0
        %750 = vmatmul.mubr.bf16.gmra.mrb[0].mxu0 %v574
        %v751 = vpop.f32.mrb[0].mxu0
        %v752 = vadd.f32 %v499, %v751
        %v753 = vpop.f32.mrb[0].mxu0
        %v754 = vpop.f32.mrb[0].mxu0
        %v755 = vadd.f32 %v499, %v754
        %v756 = vpop.f32.mrb[0].mxu0
        %757 = vmatprep.mubr.bf16.mxu0 0
        %758 = vmatmul.mubr.bf16.gmra.mrb[0].mxu0 %v575
        %v759 = vpop.f32.mrb[0].mxu0
        %v760 = vadd.f32 %v499, %v759
        %v761 = vpop.f32.mrb[0].mxu0
        %v762 = vpop.f32.mrb[0].mxu0
        %v763 = vadd.f32 %v499, %v762
        %v764 = vpop.f32.mrb[0].mxu0
        %765 = vmatprep.mubr.bf16.mxu0 0
        %766 = vmatmul.mubr.bf16.gmra.mrb[0].mxu0 %v576
        %v767 = vpop.f32.mrb[0].mxu0
        %v768 = vadd.f32 %v499, %v767
        %v769 = vpop.f32.mrb[0].mxu0
        %v770 = vpop.f32.mrb[0].mxu0
        %v771 = vadd.f32 %v499, %v770
        %v772 = vpop.f32.mrb[0].mxu0
        %773 = vmatprep.mubr.bf16.mxu0 0
        %774 = vmatmul.mubr.bf16.gmra.mrb[0].mxu0 %v577
        %v775 = vpop.f32.mrb[0].mxu0
        %v776 = vadd.f32 %v499, %v775
        %v777 = vpop.f32.mrb[0].mxu0
        %v778 = vpop.f32.mrb[0].mxu0
        %v779 = vadd.f32 %v499, %v778
        %v780 = vpop.f32.mrb[0].mxu0
        %781 = vmatprep.mubr.bf16.mxu0 0
        %782 = vmatmul.mubr.bf16.gmra.mrb[0].mxu0 %v578
        %v783 = vpop.f32.mrb[0].mxu0
        %v784 = vadd.f32 %v499, %v783
        %v785 = vpop.f32.mrb[0].mxu0
        %v786 = vpop.f32.mrb[0].mxu0
        %v787 = vadd.f32 %v499, %v786
        %v788 = vpop.f32.mrb[0].mxu0
        %789 = vmatprep.mubr.bf16.mxu0 0
        %790 = vmatmul.mubr.bf16.gmra.mrb[0].mxu0 %v579
        %v791 = vpop.f32.mrb[0].mxu0
        %v792 = vadd.f32 %v499, %v791
        %v793 = vpop.f32.mrb[0].mxu0
        %v794 = vpop.f32.mrb[0].mxu0
        %v795 = vadd.f32 %v499, %v794
        %v796 = vpop.f32.mrb[0].mxu0
        %797 = vmatprep.mubr.bf16.mxu0 0
        %798 = vmatmul.mubr.bf16.gmra.mrb[0].mxu0 %v580
        %v799 = vpop.f32.mrb[0].mxu0
        %v800 = vadd.f32 %v499, %v799
        %v801 = vpop.f32.mrb[0].mxu0
        %v802 = vpop.f32.mrb[0].mxu0
        %v803 = vadd.f32 %v499, %v802
        %v804 = vpop.f32.mrb[0].mxu0
        %805 = vdwg.mxu0
        %v806 = vmax.f32 %v680, 0.0
        %v807 = vmax.f32 %v683, 0.0
        %v808 = vmax.f32 %v688, 0.0
        %v809 = vmax.f32 %v691, 0.0
        %v810 = vmax.f32 %v696, 0.0
        %v811 = vmax.f32 %v699, 0.0
        %v812 = vmax.f32 %v704, 0.0
        %v813 = vmax.f32 %v707, 0.0
        %v814 = vmax.f32 %v712, 0.0
        %v815 = vmax.f32 %v715, 0.0
        %v816 = vmax.f32 %v720, 0.0
        %v817 = vmax.f32 %v723, 0.0
        %v818 = vmax.f32 %v728, 0.0
        %v819 = vmax.f32 %v731, 0.0
        %v820 = vmax.f32 %v736, 0.0
        %v821 = vmax.f32 %v739, 0.0
        %v822 = vmax.f32 %v744, 0.0
        %v823 = vmax.f32 %v747, 0.0
        %v824 = vmax.f32 %v752, 0.0
        %v825 = vmax.f32 %v755, 0.0
        %v826 = vmax.f32 %v760, 0.0
        %v827 = vmax.f32 %v763, 0.0
        %v828 = vmax.f32 %v768, 0.0
        %v829 = vmax.f32 %v771, 0.0
        %v830 = vmax.f32 %v776, 0.0
        %v831 = vmax.f32 %v779, 0.0
        %v832 = vmax.f32 %v784, 0.0
        %v833 = vmax.f32 %v787, 0.0
        %v834 = vmax.f32 %v792, 0.0
        %v835 = vmax.f32 %v795, 0.0
        %v836 = vmax.f32 %v800, 0.0
        %v837 = vmax.f32 %v803, 0.0
        %838 = vst [vmem:[#allocation2] sm:$0xff] 0.0
        %839 = vst [vmem:[#allocation2 + $0x8] sm:$0xff] 0.0
        %840 = vst [vmem:[#allocation2 + $0x10] sm:$0xff] 0.0
        %841 = vst [vmem:[#allocation2 + $0x18] sm:$0xff] 0.0
        %s842 = scalar_lea.vmem [#allocation2], 544
        %843 = vst [vmem:[%s842] sm:$0xff] 0.0
        %844 = vst [vmem:[%s842 + $0x8] sm:$0xff] 0.0
        %845 = vst [vmem:[%s842 + $0x10] sm:$0xff] 0.0
        %846 = vst [vmem:[%s842 + $0x18] sm:$0xff] 0.0
        %s847 = scalar_lea.vmem [#allocation2], 32
        %848 = vst [vmem:[%s847 + $0x6] sm:$0x3] 0.0
        %849 = vst [vmem:[%s847 + $0x26] sm:$0x3] 0.0
        %850 = vst [vmem:[%s847 + $0x46] sm:$0x3] 0.0
        %851 = vst [vmem:[%s847 + $0x66] sm:$0x3] 0.0
        %852 = vst [vmem:[%s847 + $0x86] sm:$0x3] 0.0
        %853 = vst [vmem:[%s847 + $0xa6] sm:$0x3] 0.0
        %854 = vst [vmem:[%s847 + $0xc6] sm:$0x3] 0.0
        %855 = vst [vmem:[%s847 + $0xe6] sm:$0x3] 0.0
        %856 = vst [vmem:[%s847 + $0x106] sm:$0x3] 0.0
        %857 = vst [vmem:[%s847 + $0x126] sm:$0x3] 0.0
        %858 = vst [vmem:[%s847 + $0x146] sm:$0x3] 0.0
        %859 = vst [vmem:[%s847 + $0x166] sm:$0x3] 0.0
        %860 = vst [vmem:[%s847 + $0x186] sm:$0x3] 0.0
        %861 = vst [vmem:[%s847 + $0x1a6] sm:$0x3] 0.0
        %862 = vst [vmem:[%s847 + $0x1c6] sm:$0x3] 0.0
        %863 = vst [vmem:[%s847 + $0x1e6] sm:$0x3] 0.0
        %864 = vst [vmem:[%s847 + $0x18] sm:$0x3] 0.0
        %865 = vst [vmem:[%s847 + $0x38] sm:$0x3] 0.0
        %866 = vst [vmem:[%s847 + $0x58] sm:$0x3] 0.0
        %867 = vst [vmem:[%s847 + $0x78] sm:$0x3] 0.0
        %868 = vst [vmem:[%s847 + $0x98] sm:$0x3] 0.0
        %869 = vst [vmem:[%s847 + $0xb8] sm:$0x3] 0.0
        %870 = vst [vmem:[%s847 + $0xd8] sm:$0x3] 0.0
        %871 = vst [vmem:[%s847 + $0xf8] sm:$0x3] 0.0
        %872 = vst [vmem:[%s847 + $0x118] sm:$0x3] 0.0
        %873 = vst [vmem:[%s847 + $0x138] sm:$0x3] 0.0
        %874 = vst [vmem:[%s847 + $0x158] sm:$0x3] 0.0
        %875 = vst [vmem:[%s847 + $0x178] sm:$0x3] 0.0
        %876 = vst [vmem:[%s847 + $0x198] sm:$0x3] 0.0
        %877 = vst [vmem:[%s847 + $0x1b8] sm:$0x3] 0.0
        %878 = vst [vmem:[%s847 + $0x1d8] sm:$0x3] 0.0
        %879 = vst [vmem:[%s847 + $0x1f8] sm:$0x3] 0.0
        %880 = vst [vmem:[%s847 + $0x8] sm:$0xff] %v806
        %881 = vst [vmem:[%s847 + $0x10] sm:$0xff] %v807
        %882 = vst [vmem:[%s847 + $0x28] sm:$0xff] %v808
        %883 = vst [vmem:[%s847 + $0x30] sm:$0xff] %v809
        %884 = vst [vmem:[%s847 + $0x48] sm:$0xff] %v810
        %885 = vst [vmem:[%s847 + $0x50] sm:$0xff] %v811
        %886 = vst [vmem:[%s847 + $0x68] sm:$0xff] %v812
        %887 = vst [vmem:[%s847 + $0x70] sm:$0xff] %v813
        %888 = vst [vmem:[%s847 + $0x88] sm:$0xff] %v814
        %889 = vst [vmem:[%s847 + $0x90] sm:$0xff] %v815
        %890 = vst [vmem:[%s847 + $0xa8] sm:$0xff] %v816
        %891 = vst [vmem:[%s847 + $0xb0] sm:$0xff] %v817
        %892 = vst [vmem:[%s847 + $0xc8] sm:$0xff] %v818
        %893 = vst [vmem:[%s847 + $0xd0] sm:$0xff] %v819
        %894 = vst [vmem:[%s847 + $0xe8] sm:$0xff] %v820
        %895 = vst [vmem:[%s847 + $0xf0] sm:$0xff] %v821
        %896 = vst [vmem:[%s847 + $0x108] sm:$0xff] %v822
        %897 = vst [vmem:[%s847 + $0x110] sm:$0xff] %v823
        %898 = vst [vmem:[%s847 + $0x128] sm:$0xff] %v824
        %899 = vst [vmem:[%s847 + $0x130] sm:$0xff] %v825
        %900 = vst [vmem:[%s847 + $0x148] sm:$0xff] %v826
        %901 = vst [vmem:[%s847 + $0x150] sm:$0xff] %v827
        %902 = vst [vmem:[%s847 + $0x168] sm:$0xff] %v828
        %903 = vst [vmem:[%s847 + $0x170] sm:$0xff] %v829
        %904 = vst [vmem:[%s847 + $0x188] sm:$0xff] %v830
        %905 = vst [vmem:[%s847 + $0x190] sm:$0xff] %v831
        %906 = vst [vmem:[%s847 + $0x1a8] sm:$0xff] %v832
        %907 = vst [vmem:[%s847 + $0x1b0] sm:$0xff] %v833
        %908 = vst [vmem:[%s847 + $0x1c8] sm:$0xff] %v834
        %909 = vst [vmem:[%s847 + $0x1d0] sm:$0xff] %v835
        %910 = vst [vmem:[%s847 + $0x1e8] sm:$0xff] %v836
        %911 = vst [vmem:[%s847 + $0x1f0] sm:$0xff] %v837
        %s912 = scalar_lea.vmem [#allocation2], 7
        %v913 = vld [vmem:[%s912] ss:$2 sm:$0xff]
        %s914 = scalar_lea.vmem [#allocation2], 71
        %v915 = vld [vmem:[%s914] ss:$2 sm:$0xff]
        %s916 = scalar_lea.vmem [#allocation2], 135
        %v917 = vld [vmem:[%s916] ss:$2 sm:$0xff]
        %s918 = scalar_lea.vmem [#allocation2], 199
        %v919 = vld [vmem:[%s918] ss:$2 sm:$0xff]
        %s920 = scalar_lea.vmem [#allocation2], 263
        %v921 = vld [vmem:[%s920] ss:$2 sm:$0xff]
        %s922 = scalar_lea.vmem [#allocation2], 327
        %v923 = vld [vmem:[%s922] ss:$2 sm:$0xff]
        %s924 = scalar_lea.vmem [#allocation2], 391
        %v925 = vld [vmem:[%s924] ss:$2 sm:$0xff]
        %s926 = scalar_lea.vmem [#allocation2], 455
        %v927 = vld [vmem:[%s926] ss:$2 sm:$0xff]
        %v928 = vpack.c.bf16 %v915, %v913
        %v929 = vpack.c.bf16 %v919, %v917
        %v930 = vpack.c.bf16 %v923, %v921
        %v931 = vpack.c.bf16 %v927, %v925
        %932 = vst [vmem:[#allocation3] sm:$0xff] %v928
        %933 = vst [vmem:[#allocation3 + $0x48] sm:$0xff] %v929
        %934 = vst [vmem:[#allocation3 + $0x90] sm:$0xff] %v930
        %935 = vst [vmem:[#allocation3 + $0xd8] sm:$0xff] %v931
        %s936 = scalar_lea.vmem [#allocation2], 8
        %v937 = vld [vmem:[%s936] ss:$2 sm:$0xff]
        %s938 = scalar_lea.vmem [#allocation2], 72
        %v939 = vld [vmem:[%s938] ss:$2 sm:$0xff]
        %s940 = scalar_lea.vmem [#allocation2], 136
        %v941 = vld [vmem:[%s940] ss:$2 sm:$0xff]
        %s942 = scalar_lea.vmem [#allocation2], 200
        %v943 = vld [vmem:[%s942] ss:$2 sm:$0xff]
        %s944 = scalar_lea.vmem [#allocation2], 264
        %v945 = vld [vmem:[%s944] ss:$2 sm:$0xff]
        %s946 = scalar_lea.vmem [#allocation2], 328
        %v947 = vld [vmem:[%s946] ss:$2 sm:$0xff]
        %s948 = scalar_lea.vmem [#allocation2], 392
        %v949 = vld [vmem:[%s948] ss:$2 sm:$0xff]
        %s950 = scalar_lea.vmem [#allocation2], 456
        %v951 = vld [vmem:[%s950] ss:$2 sm:$0xff]
        %v952 = vpack.c.bf16 %v939, %v937
        %v953 = vpack.c.bf16 %v943, %v941
        %v954 = vpack.c.bf16 %v947, %v945
        %v955 = vpack.c.bf16 %v951, %v949
        %956 = vst [vmem:[#allocation3 + $0x8] sm:$0xff] %v952
        %957 = vst [vmem:[#allocation3 + $0x50] sm:$0xff] %v953
        %958 = vst [vmem:[#allocation3 + $0x98] sm:$0xff] %v954
        %959 = vst [vmem:[#allocation3 + $0xe0] sm:$0xff] %v955
        %s960 = scalar_lea.vmem [#allocation2], 9
        %v961 = vld [vmem:[%s960] ss:$2 sm:$0xff]
        %s962 = scalar_lea.vmem [#allocation2], 73
        %v963 = vld [vmem:[%s962] ss:$2 sm:$0xff]
        %s964 = scalar_lea.vmem [#allocation2], 137
        %v965 = vld [vmem:[%s964] ss:$2 sm:$0xff]
        %s966 = scalar_lea.vmem [#allocation2], 201
        %v967 = vld [vmem:[%s966] ss:$2 sm:$0xff]
        %s968 = scalar_lea.vmem [#allocation2], 265
        %v969 = vld [vmem:[%s968] ss:$2 sm:$0xff]
        %s970 = scalar_lea.vmem [#allocation2], 329
        %v971 = vld [vmem:[%s970] ss:$2 sm:$0xff]
        %s972 = scalar_lea.vmem [#allocation2], 393
        %v973 = vld [vmem:[%s972] ss:$2 sm:$0xff]
        %s974 = scalar_lea.vmem [#allocation2], 457
        %v975 = vld [vmem:[%s974] ss:$2 sm:$0xff]
        %v976 = vpack.c.bf16 %v963, %v961
        %v977 = vpack.c.bf16 %v967, %v965
        %v978 = vpack.c.bf16 %v971, %v969
        %v979 = vpack.c.bf16 %v975, %v973
        %980 = vst [vmem:[#allocation3 + $0x10] sm:$0xff] %v976
        %981 = vst [vmem:[#allocation3 + $0x58] sm:$0xff] %v977
        %982 = vst [vmem:[#allocation3 + $0xa0] sm:$0xff] %v978
        %983 = vst [vmem:[#allocation3 + $0xe8] sm:$0xff] %v979
        %s984 = scalar_lea.vmem %s847, 7 [#allocation2]
        %v985 = vld [vmem:[%s984] ss:$2 sm:$0xff]
        %s986 = scalar_lea.vmem %s847, 71 [#allocation2]
        %v987 = vld [vmem:[%s986] ss:$2 sm:$0xff]
        %s988 = scalar_lea.vmem %s847, 135 [#allocation2]
        %v989 = vld [vmem:[%s988] ss:$2 sm:$0xff]
        %s990 = scalar_lea.vmem %s847, 199 [#allocation2]
        %v991 = vld [vmem:[%s990] ss:$2 sm:$0xff]
        %s992 = scalar_lea.vmem %s847, 263 [#allocation2]
        %v993 = vld [vmem:[%s992] ss:$2 sm:$0xff]
        %s994 = scalar_lea.vmem %s847, 327 [#allocation2]
        %v995 = vld [vmem:[%s994] ss:$2 sm:$0xff]
        %s996 = scalar_lea.vmem %s847, 391 [#allocation2]
        %v997 = vld [vmem:[%s996] ss:$2 sm:$0xff]
        %s998 = scalar_lea.vmem %s847, 455 [#allocation2]
        %v999 = vld [vmem:[%s998] ss:$2 sm:$0xff]
        %v1000 = vpack.c.bf16 %v987, %v985
        %v1001 = vpack.c.bf16 %v991, %v989
        %v1002 = vpack.c.bf16 %v995, %v993
        %v1003 = vpack.c.bf16 %v999, %v997
        %1004 = vst [vmem:[#allocation3 + $0x18] sm:$0xff] %v1000
        %1005 = vst [vmem:[#allocation3 + $0x60] sm:$0xff] %v1001
        %1006 = vst [vmem:[#allocation3 + $0xa8] sm:$0xff] %v1002
        %1007 = vst [vmem:[#allocation3 + $0xf0] sm:$0xff] %v1003
        %s1008 = scalar_lea.vmem %s847, 8 [#allocation2]
        %v1009 = vld [vmem:[%s1008] ss:$2 sm:$0xff]
        %s1010 = scalar_lea.vmem %s847, 72 [#allocation2]
        %v1011 = vld [vmem:[%s1010] ss:$2 sm:$0xff]
        %s1012 = scalar_lea.vmem %s847, 136 [#allocation2]
        %v1013 = vld [vmem:[%s1012] ss:$2 sm:$0xff]
        %s1014 = scalar_lea.vmem %s847, 200 [#allocation2]
        %v1015 = vld [vmem:[%s1014] ss:$2 sm:$0xff]
        %s1016 = scalar_lea.vmem %s847, 264 [#allocation2]
        %v1017 = vld [vmem:[%s1016] ss:$2 sm:$0xff]
        %s1018 = scalar_lea.vmem %s847, 328 [#allocation2]
        %v1019 = vld [vmem:[%s1018] ss:$2 sm:$0xff]
        %s1020 = scalar_lea.vmem %s847, 392 [#allocation2]
        %v1021 = vld [vmem:[%s1020] ss:$2 sm:$0xff]
        %s1022 = scalar_lea.vmem %s847, 456 [#allocation2]
        %v1023 = vld [vmem:[%s1022] ss:$2 sm:$0xff]
        %v1024 = vpack.c.bf16 %v1011, %v1009
        %v1025 = vpack.c.bf16 %v1015, %v1013
        %v1026 = vpack.c.bf16 %v1019, %v1017
        %v1027 = vpack.c.bf16 %v1023, %v1021
        %1028 = vst [vmem:[#allocation3 + $0x20] sm:$0xff] %v1024
        %1029 = vst [vmem:[#allocation3 + $0x68] sm:$0xff] %v1025
        %1030 = vst [vmem:[#allocation3 + $0xb0] sm:$0xff] %v1026
        %1031 = vst [vmem:[#allocation3 + $0xf8] sm:$0xff] %v1027
        %s1032 = scalar_lea.vmem %s847, 9 [#allocation2]
        %v1033 = vld [vmem:[%s1032] ss:$2 sm:$0xff]
        %s1034 = scalar_lea.vmem %s847, 73 [#allocation2]
        %v1035 = vld [vmem:[%s1034] ss:$2 sm:$0xff]
        %s1036 = scalar_lea.vmem %s847, 137 [#allocation2]
        %v1037 = vld [vmem:[%s1036] ss:$2 sm:$0xff]
        %s1038 = scalar_lea.vmem %s847, 201 [#allocation2]
        %v1039 = vld [vmem:[%s1038] ss:$2 sm:$0xff]
        %s1040 = scalar_lea.vmem %s847, 265 [#allocation2]
        %v1041 = vld [vmem:[%s1040] ss:$2 sm:$0xff]
        %s1042 = scalar_lea.vmem %s847, 329 [#allocation2]
        %v1043 = vld [vmem:[%s1042] ss:$2 sm:$0xff]
        %s1044 = scalar_lea.vmem %s847, 393 [#allocation2]
        %v1045 = vld [vmem:[%s1044] ss:$2 sm:$0xff]
        %s1046 = scalar_lea.vmem %s847, 457 [#allocation2]
        %v1047 = vld [vmem:[%s1046] ss:$2 sm:$0xff]
        %v1048 = vpack.c.bf16 %v1035, %v1033
        %v1049 = vpack.c.bf16 %v1039, %v1037
        %v1050 = vpack.c.bf16 %v1043, %v1041
        %v1051 = vpack.c.bf16 %v1047, %v1045
        %1052 = vst [vmem:[#allocation3 + $0x28] sm:$0xff] %v1048
        %1053 = vst [vmem:[#allocation3 + $0x70] sm:$0xff] %v1049
        %1054 = vst [vmem:[#allocation3 + $0xb8] sm:$0xff] %v1050
        %1055 = vst [vmem:[#allocation3 + $0x100] sm:$0xff] %v1051
        %s1056 = scalar_lea.vmem [#allocation2], 64
        %s1057 = scalar_lea.vmem %s1056, 7 [#allocation2]
        %v1058 = vld [vmem:[%s1057] ss:$2 sm:$0xff]
        %s1059 = scalar_lea.vmem %s1056, 71 [#allocation2]
        %v1060 = vld [vmem:[%s1059] ss:$2 sm:$0xff]
        %s1061 = scalar_lea.vmem %s1056, 135 [#allocation2]
        %v1062 = vld [vmem:[%s1061] ss:$2 sm:$0xff]
        %s1063 = scalar_lea.vmem %s1056, 199 [#allocation2]
        %v1064 = vld [vmem:[%s1063] ss:$2 sm:$0xff]
        %s1065 = scalar_lea.vmem %s1056, 263 [#allocation2]
        %v1066 = vld [vmem:[%s1065] ss:$2 sm:$0xff]
        %s1067 = scalar_lea.vmem %s1056, 327 [#allocation2]
        %v1068 = vld [vmem:[%s1067] ss:$2 sm:$0xff]
        %s1069 = scalar_lea.vmem %s1056, 391 [#allocation2]
        %v1070 = vld [vmem:[%s1069] ss:$2 sm:$0xff]
        %s1071 = scalar_lea.vmem %s1056, 455 [#allocation2]
        %v1072 = vld [vmem:[%s1071] ss:$2 sm:$0xff]
        %v1073 = vpack.c.bf16 %v1060, %v1058
        %v1074 = vpack.c.bf16 %v1064, %v1062
        %v1075 = vpack.c.bf16 %v1068, %v1066
        %v1076 = vpack.c.bf16 %v1072, %v1070
        %1077 = vst [vmem:[#allocation3 + $0x30] sm:$0xff] %v1073
        %1078 = vst [vmem:[#allocation3 + $0x78] sm:$0xff] %v1074
        %1079 = vst [vmem:[#allocation3 + $0xc0] sm:$0xff] %v1075
        %1080 = vst [vmem:[#allocation3 + $0x108] sm:$0xff] %v1076
        %s1081 = scalar_lea.vmem %s1056, 8 [#allocation2]
        %v1082 = vld [vmem:[%s1081] ss:$2 sm:$0xff]
        %s1083 = scalar_lea.vmem %s1056, 72 [#allocation2]
        %v1084 = vld [vmem:[%s1083] ss:$2 sm:$0xff]
        %s1085 = scalar_lea.vmem %s1056, 136 [#allocation2]
        %v1086 = vld [vmem:[%s1085] ss:$2 sm:$0xff]
        %s1087 = scalar_lea.vmem %s1056, 200 [#allocation2]
        %v1088 = vld [vmem:[%s1087] ss:$2 sm:$0xff]
        %s1089 = scalar_lea.vmem %s1056, 264 [#allocation2]
        %v1090 = vld [vmem:[%s1089] ss:$2 sm:$0xff]
        %s1091 = scalar_lea.vmem %s1056, 328 [#allocation2]
        %v1092 = vld [vmem:[%s1091] ss:$2 sm:$0xff]
        %s1093 = scalar_lea.vmem %s1056, 392 [#allocation2]
        %v1094 = vld [vmem:[%s1093] ss:$2 sm:$0xff]
        %s1095 = scalar_lea.vmem %s1056, 456 [#allocation2]
        %v1096 = vld [vmem:[%s1095] ss:$2 sm:$0xff]
        %v1097 = vpack.c.bf16 %v1084, %v1082
        %v1098 = vpack.c.bf16 %v1088, %v1086
        %v1099 = vpack.c.bf16 %v1092, %v1090
        %v1100 = vpack.c.bf16 %v1096, %v1094
        %1101 = vst [vmem:[#allocation3 + $0x38] sm:$0xff] %v1097
        %1102 = vst [vmem:[#allocation3 + $0x80] sm:$0xff] %v1098
        %1103 = vst [vmem:[#allocation3 + $0xc8] sm:$0xff] %v1099
        %1104 = vst [vmem:[#allocation3 + $0x110] sm:$0xff] %v1100
        %s1105 = scalar_lea.vmem %s1056, 9 [#allocation2]
        %v1106 = vld [vmem:[%s1105] ss:$2 sm:$0xff]
        %s1107 = scalar_lea.vmem %s1056, 73 [#allocation2]
        %v1108 = vld [vmem:[%s1107] ss:$2 sm:$0xff]
        %s1109 = scalar_lea.vmem %s1056, 137 [#allocation2]
        %v1110 = vld [vmem:[%s1109] ss:$2 sm:$0xff]
        %s1111 = scalar_lea.vmem %s1056, 201 [#allocation2]
        %v1112 = vld [vmem:[%s1111] ss:$2 sm:$0xff]
        %s1113 = scalar_lea.vmem %s1056, 265 [#allocation2]
        %v1114 = vld [vmem:[%s1113] ss:$2 sm:$0xff]
        %s1115 = scalar_lea.vmem %s1056, 329 [#allocation2]
        %v1116 = vld [vmem:[%s1115] ss:$2 sm:$0xff]
        %s1117 = scalar_lea.vmem %s1056, 393 [#allocation2]
        %v1118 = vld [vmem:[%s1117] ss:$2 sm:$0xff]
        %s1119 = scalar_lea.vmem %s1056, 457 [#allocation2]
        %v1120 = vld [vmem:[%s1119] ss:$2 sm:$0xff]
        %v1121 = vpack.c.bf16 %v1108, %v1106
        %v1122 = vpack.c.bf16 %v1112, %v1110
        %v1123 = vpack.c.bf16 %v1116, %v1114
        %v1124 = vpack.c.bf16 %v1120, %v1118
        %1125 = vst [vmem:[#allocation3 + $0x40] sm:$0xff] %v1121
        %1126 = vst [vmem:[#allocation3 + $0x88] sm:$0xff] %v1122
        %1127 = vst [vmem:[#allocation3 + $0xd0] sm:$0xff] %v1123
        %1128 = vst [vmem:[#allocation3 + $0x118] sm:$0xff] %v1124
        %v1129 = vld [vmem:[#allocation3] sm:$0xff]
        %v1130 = vld [vmem:[#allocation3 + $0x8] sm:$0xff]
        %v1131 = vld [vmem:[#allocation3 + $0x10] sm:$0xff]
        %v1132 = vld [vmem:[#allocation3 + $0x18] sm:$0xff]
        %v1133 = vld [vmem:[#allocation3 + $0x20] sm:$0xff]
        %v1134 = vld [vmem:[#allocation3 + $0x28] sm:$0xff]
        %v1135 = vld [vmem:[#allocation3 + $0x30] sm:$0xff]
        %v1136 = vld [vmem:[#allocation3 + $0x38] sm:$0xff]
        %v1137 = vld [vmem:[#allocation3 + $0x40] sm:$0xff]
        %v1138 = vld [vmem:[#allocation3 + $0x48] sm:$0xff]
        %v1139 = vld [vmem:[#allocation3 + $0x50] sm:$0xff]
        %v1140 = vld [vmem:[#allocation3 + $0x58] sm:$0xff]
        %v1141 = vld [vmem:[#allocation3 + $0x60] sm:$0xff]
        %v1142 = vld [vmem:[#allocation3 + $0x68] sm:$0xff]
        %v1143 = vld [vmem:[#allocation3 + $0x70] sm:$0xff]
        %v1144 = vld [vmem:[#allocation3 + $0x78] sm:$0xff]
        %v1145 = vld [vmem:[#allocation3 + $0x80] sm:$0xff]
        %v1146 = vld [vmem:[#allocation3 + $0x88] sm:$0xff]
        %v1147 = vld [vmem:[#allocation3 + $0x90] sm:$0xff]
        %v1148 = vld [vmem:[#allocation3 + $0x98] sm:$0xff]
        %v1149 = vld [vmem:[#allocation3 + $0xa0] sm:$0xff]
        %v1150 = vld [vmem:[#allocation3 + $0xa8] sm:$0xff]
        %v1151 = vld [vmem:[#allocation3 + $0xb0] sm:$0xff]
        %v1152 = vld [vmem:[#allocation3 + $0xb8] sm:$0xff]
        %v1153 = vld [vmem:[#allocation3 + $0xc0] sm:$0xff]
        %v1154 = vld [vmem:[#allocation3 + $0xc8] sm:$0xff]
        %v1155 = vld [vmem:[#allocation3 + $0xd0] sm:$0xff]
        %v1156 = vld [vmem:[#allocation3 + $0xd8] sm:$0xff]
        %v1157 = vld [vmem:[#allocation3 + $0xe0] sm:$0xff]
        %v1158 = vld [vmem:[#allocation3 + $0xe8] sm:$0xff]
        %v1159 = vld [vmem:[#allocation3 + $0xf0] sm:$0xff]
        %v1160 = vld [vmem:[#allocation3 + $0xf8] sm:$0xff]
        %v1161 = vld [vmem:[#allocation3 + $0x100] sm:$0xff]
        %v1162 = vld [vmem:[#allocation3 + $0x108] sm:$0xff]
        %v1163 = vld [vmem:[#allocation3 + $0x110] sm:$0xff]
        %v1164 = vld [vmem:[#allocation3 + $0x118] sm:$0xff]
        %v1165 = vld [vmem:[#allocation12] sm:$0xf]
        %v1166 = vld [vmem:[#allocation12 + $0x4] sm:$0xf]
        %v1167 = vld [vmem:[#allocation12 + $0x8] sm:$0xf]
        %v1168 = vld [vmem:[#allocation12 + $0xc] sm:$0xf]
        %v1169 = vld [vmem:[#allocation12 + $0x10] sm:$0xf]
        %v1170 = vld [vmem:[#allocation12 + $0x14] sm:$0xf]
        %v1171 = vld [vmem:[#allocation12 + $0x18] sm:$0xf]
        %v1172 = vld [vmem:[#allocation12 + $0x1c] sm:$0xf]
        %v1173 = vld [vmem:[#allocation12 + $0x20] sm:$0xf]
        %v1174 = vld [vmem:[#allocation12 + $0x24] sm:$0xf]
        %v1175 = vld [vmem:[#allocation12 + $0x28] sm:$0xf]
        %v1176 = vld [vmem:[#allocation12 + $0x2c] sm:$0xf]
        %v1177 = vld [vmem:[#allocation12 + $0x30] sm:$0xf]
        %v1178 = vld [vmem:[#allocation12 + $0x34] sm:$0xf]
        %v1179 = vld [vmem:[#allocation12 + $0x38] sm:$0xf]
        %v1180 = vld [vmem:[#allocation12 + $0x3c] sm:$0xf]
        %v1181 = vld [vmem:[#allocation12 + $0x40] sm:$0xf]
        %v1182 = vld [vmem:[#allocation12 + $0x44] sm:$0xf]
        %v1183 = vld [vmem:[#allocation12 + $0x48] sm:$0xf]
        %v1184 = vld [vmem:[#allocation12 + $0x4c] sm:$0xf]
        %v1185 = vld [vmem:[#allocation12 + $0x50] sm:$0xf]
        %v1186 = vld [vmem:[#allocation12 + $0x54] sm:$0xf]
        %v1187 = vld [vmem:[#allocation12 + $0x58] sm:$0xf]
        %v1188 = vld [vmem:[#allocation12 + $0x5c] sm:$0xf]
        %v1189 = vld [vmem:[#allocation12 + $0x60] sm:$0xf]
        %v1190 = vld [vmem:[#allocation12 + $0x64] sm:$0xf]
        %v1191 = vld [vmem:[#allocation12 + $0x68] sm:$0xf]
        %v1192 = vld [vmem:[#allocation12 + $0x6c] sm:$0xf]
        %v1193 = vld [vmem:[#allocation12 + $0x70] sm:$0xf]
        %v1194 = vld [vmem:[#allocation12 + $0x74] sm:$0xf]
        %v1195 = vld [vmem:[#allocation12 + $0x78] sm:$0xf]
        %v1196 = vld [vmem:[#allocation12 + $0x7c] sm:$0xf]
        %v1197 = vld [vmem:[#allocation12 + $0x80] sm:$0xf]
        %v1198 = vld [vmem:[#allocation12 + $0x84] sm:$0xf]
        %v1199 = vld [vmem:[#allocation12 + $0x88] sm:$0xf]
        %v1200 = vld [vmem:[#allocation12 + $0x8c] sm:$0xf]
        %v1201 = vld [vmem:[#allocation12 + $0x90] sm:$0xf]
        %v1202 = vld [vmem:[#allocation12 + $0x94] sm:$0xf]
        %v1203 = vld [vmem:[#allocation12 + $0x98] sm:$0xf]
        %v1204 = vld [vmem:[#allocation12 + $0x9c] sm:$0xf]
        %v1205 = vld [vmem:[#allocation12 + $0xa0] sm:$0xf]
        %v1206 = vld [vmem:[#allocation12 + $0xa4] sm:$0xf]
        %v1207 = vld [vmem:[#allocation12 + $0xa8] sm:$0xf]
        %v1208 = vld [vmem:[#allocation12 + $0xac] sm:$0xf]
        %v1209 = vld [vmem:[#allocation12 + $0xb0] sm:$0xf]
        %v1210 = vld [vmem:[#allocation12 + $0xb4] sm:$0xf]
        %v1211 = vld [vmem:[#allocation12 + $0xb8] sm:$0xf]
        %v1212 = vld [vmem:[#allocation12 + $0xbc] sm:$0xf]
        %v1213 = vld [vmem:[#allocation12 + $0xc0] sm:$0xf]
        %v1214 = vld [vmem:[#allocation12 + $0xc4] sm:$0xf]
        %v1215 = vld [vmem:[#allocation12 + $0xc8] sm:$0xf]
        %v1216 = vld [vmem:[#allocation12 + $0xcc] sm:$0xf]
        %v1217 = vld [vmem:[#allocation12 + $0xd0] sm:$0xf]
        %v1218 = vld [vmem:[#allocation12 + $0xd4] sm:$0xf]
        %v1219 = vld [vmem:[#allocation12 + $0xd8] sm:$0xf]
        %v1220 = vld [vmem:[#allocation12 + $0xdc] sm:$0xf]
        %v1221 = vld [vmem:[#allocation12 + $0xe0] sm:$0xf]
        %v1222 = vld [vmem:[#allocation12 + $0xe4] sm:$0xf]
        %v1223 = vld [vmem:[#allocation12 + $0xe8] sm:$0xf]
        %v1224 = vld [vmem:[#allocation12 + $0xec] sm:$0xf]
        %v1225 = vld [vmem:[#allocation12 + $0xf0] sm:$0xf]
        %v1226 = vld [vmem:[#allocation12 + $0xf4] sm:$0xf]
        %v1227 = vld [vmem:[#allocation12 + $0xf8] sm:$0xf]
        %v1228 = vld [vmem:[#allocation12 + $0xfc] sm:$0xf]
        %v1229 = vld [vmem:[#allocation12 + $0x100] sm:$0xf]
        %v1230 = vld [vmem:[#allocation12 + $0x104] sm:$0xf]
        %v1231 = vld [vmem:[#allocation12 + $0x108] sm:$0xf]
        %v1232 = vld [vmem:[#allocation12 + $0x10c] sm:$0xf]
        %v1233 = vld [vmem:[#allocation12 + $0x110] sm:$0xf]
        %v1234 = vld [vmem:[#allocation12 + $0x114] sm:$0xf]
        %v1235 = vld [vmem:[#allocation12 + $0x118] sm:$0xf]
        %v1236 = vld [vmem:[#allocation12 + $0x11c] sm:$0xf]
        %v1237 = vld [vmem:[#allocation12 + $0x120] sm:$0xf]
        %v1238 = vld [vmem:[#allocation12 + $0x124] sm:$0xf]
        %v1239 = vld [vmem:[#allocation12 + $0x128] sm:$0xf]
        %v1240 = vld [vmem:[#allocation12 + $0x12c] sm:$0xf]
        %v1241 = vld [vmem:[#allocation12 + $0x130] sm:$0xf]
        %v1242 = vld [vmem:[#allocation12 + $0x134] sm:$0xf]
        %v1243 = vld [vmem:[#allocation12 + $0x138] sm:$0xf]
        %v1244 = vld [vmem:[#allocation12 + $0x13c] sm:$0xf]
        %v1245 = vld [vmem:[#allocation12 + $0x140] sm:$0xf]
        %v1246 = vld [vmem:[#allocation12 + $0x144] sm:$0xf]
        %v1247 = vld [vmem:[#allocation12 + $0x148] sm:$0xf]
        %v1248 = vld [vmem:[#allocation12 + $0x14c] sm:$0xf]
        %v1249 = vld [vmem:[#allocation12 + $0x150] sm:$0xf]
        %v1250 = vld [vmem:[#allocation12 + $0x154] sm:$0xf]
        %v1251 = vld [vmem:[#allocation12 + $0x158] sm:$0xf]
        %v1252 = vld [vmem:[#allocation12 + $0x15c] sm:$0xf]
        %v1253 = vld [vmem:[#allocation12 + $0x160] sm:$0xf]
        %v1254 = vld [vmem:[#allocation12 + $0x164] sm:$0xf]
        %v1255 = vld [vmem:[#allocation12 + $0x168] sm:$0xf]
        %v1256 = vld [vmem:[#allocation12 + $0x16c] sm:$0xf]
        %v1257 = vld [vmem:[#allocation12 + $0x170] sm:$0xf]
        %v1258 = vld [vmem:[#allocation12 + $0x174] sm:$0xf]
        %v1259 = vld [vmem:[#allocation12 + $0x178] sm:$0xf]
        %v1260 = vld [vmem:[#allocation12 + $0x17c] sm:$0xf]
        %v1261 = vld [vmem:[#allocation12 + $0x180] sm:$0xf]
        %v1262 = vld [vmem:[#allocation12 + $0x184] sm:$0xf]
        %v1263 = vld [vmem:[#allocation12 + $0x188] sm:$0xf]
        %v1264 = vld [vmem:[#allocation12 + $0x18c] sm:$0xf]
        %v1265 = vld [vmem:[#allocation12 + $0x190] sm:$0xf]
        %v1266 = vld [vmem:[#allocation12 + $0x194] sm:$0xf]
        %v1267 = vld [vmem:[#allocation12 + $0x198] sm:$0xf]
        %v1268 = vld [vmem:[#allocation12 + $0x19c] sm:$0xf]
        %v1269 = vld [vmem:[#allocation12 + $0x1a0] sm:$0xf]
        %v1270 = vld [vmem:[#allocation12 + $0x1a4] sm:$0xf]
        %v1271 = vld [vmem:[#allocation12 + $0x1a8] sm:$0xf]
        %v1272 = vld [vmem:[#allocation12 + $0x1ac] sm:$0xf]
        %v1273 = vld [vmem:[#allocation12 + $0x1b0] sm:$0xf]
        %v1274 = vld [vmem:[#allocation12 + $0x1b4] sm:$0xf]
        %v1275 = vld [vmem:[#allocation12 + $0x1b8] sm:$0xf]
        %v1276 = vld [vmem:[#allocation12 + $0x1bc] sm:$0xf]
        %v1277 = vld [vmem:[#allocation12 + $0x1c0] sm:$0xf]
        %v1278 = vld [vmem:[#allocation12 + $0x1c4] sm:$0xf]
        %v1279 = vld [vmem:[#allocation12 + $0x1c8] sm:$0xf]
        %v1280 = vld [vmem:[#allocation12 + $0x1cc] sm:$0xf]
        %v1281 = vld [vmem:[#allocation12 + $0x1d0] sm:$0xf]
        %v1282 = vld [vmem:[#allocation12 + $0x1d4] sm:$0xf]
        %v1283 = vld [vmem:[#allocation12 + $0x1d8] sm:$0xf]
        %v1284 = vld [vmem:[#allocation12 + $0x1dc] sm:$0xf]
        %v1285 = vld [vmem:[#allocation12 + $0x1e0] sm:$0xf]
        %v1286 = vld [vmem:[#allocation12 + $0x1e4] sm:$0xf]
        %v1287 = vld [vmem:[#allocation12 + $0x1e8] sm:$0xf]
        %v1288 = vld [vmem:[#allocation12 + $0x1ec] sm:$0xf]
        %v1289 = vld [vmem:[#allocation12 + $0x1f0] sm:$0xf]
        %v1290 = vld [vmem:[#allocation12 + $0x1f4] sm:$0xf]
        %v1291 = vld [vmem:[#allocation12 + $0x1f8] sm:$0xf]
        %v1292 = vld [vmem:[#allocation12 + $0x1fc] sm:$0xf]
        %v1293 = vld [vmem:[#allocation12 + $0x200] sm:$0xf]
        %v1294 = vld [vmem:[#allocation12 + $0x204] sm:$0xf]
        %v1295 = vld [vmem:[#allocation12 + $0x208] sm:$0xf]
        %v1296 = vld [vmem:[#allocation12 + $0x20c] sm:$0xf]
        %v1297 = vld [vmem:[#allocation12 + $0x210] sm:$0xf]
        %v1298 = vld [vmem:[#allocation12 + $0x214] sm:$0xf]
        %v1299 = vld [vmem:[#allocation12 + $0x218] sm:$0xf]
        %v1300 = vld [vmem:[#allocation12 + $0x21c] sm:$0xf]
        %v1301 = vld [vmem:[#allocation12 + $0x220] sm:$0xf]
        %v1302 = vld [vmem:[#allocation12 + $0x224] sm:$0xf]
        %v1303 = vld [vmem:[#allocation12 + $0x228] sm:$0xf]
        %v1304 = vld [vmem:[#allocation12 + $0x22c] sm:$0xf]
        %v1305 = vld [vmem:[#allocation12 + $0x230] sm:$0xf]
        %v1306 = vld [vmem:[#allocation12 + $0x234] sm:$0xf]
        %v1307 = vld [vmem:[#allocation12 + $0x238] sm:$0xf]
        %v1308 = vld [vmem:[#allocation12 + $0x23c] sm:$0xf]
        %v1309 = vld [vmem:[#allocation13] sm:$0x1]
        %v1311 = vlaneseq
        %v1312 = vshrl.u32 %v1311, 7
        %v1313 = vsub.s32 0, %v1312
        %v1314 = vrot.slane %v1309, %v1313
        %v1460 = vunpack.c.l.b16 %v1165
        %v1461 = vunpack.c.l.b16 %v1166
        %v1462 = vunpack.c.l.b16 %v1167
        %v1463 = vunpack.c.l.b16 %v1168
        %v1464 = vunpack.c.l.b16 %v1169
        %v1465 = vunpack.c.l.b16 %v1170
        %v1466 = vunpack.c.l.b16 %v1171
        %v1467 = vunpack.c.l.b16 %v1172
        %v1468 = vunpack.c.l.b16 %v1173
        %v1469 = vunpack.c.l.b16 %v1174
        %v1470 = vunpack.c.l.b16 %v1175
        %v1471 = vunpack.c.l.b16 %v1176
        %v1472 = vunpack.c.l.b16 %v1177
        %v1473 = vunpack.c.l.b16 %v1178
        %v1474 = vunpack.c.l.b16 %v1179
        %v1475 = vunpack.c.l.b16 %v1180
        %v1476 = vunpack.c.l.b16 %v1181
        %v1477 = vunpack.c.l.b16 %v1182
        %v1478 = vunpack.c.l.b16 %v1183
        %v1479 = vunpack.c.l.b16 %v1184
        %v1480 = vunpack.c.l.b16 %v1185
        %v1481 = vunpack.c.l.b16 %v1186
        %v1482 = vunpack.c.l.b16 %v1187
        %v1483 = vunpack.c.l.b16 %v1188
        %v1484 = vunpack.c.l.b16 %v1189
        %v1485 = vunpack.c.l.b16 %v1190
        %v1486 = vunpack.c.l.b16 %v1191
        %v1487 = vunpack.c.l.b16 %v1192
        %v1488 = vunpack.c.l.b16 %v1193
        %v1489 = vunpack.c.l.b16 %v1194
        %v1490 = vunpack.c.l.b16 %v1195
        %v1491 = vunpack.c.l.b16 %v1196
        %v1492 = vunpack.c.l.b16 %v1197
        %v1493 = vunpack.c.l.b16 %v1198
        %v1494 = vunpack.c.l.b16 %v1199
        %v1495 = vunpack.c.l.b16 %v1200
        %v1496 = vunpack.c.l.b16 %v1201
        %v1497 = vunpack.c.l.b16 %v1202
        %v1498 = vunpack.c.l.b16 %v1203
        %v1499 = vunpack.c.l.b16 %v1204
        %v1500 = vunpack.c.l.b16 %v1205
        %v1501 = vunpack.c.l.b16 %v1206
        %v1502 = vunpack.c.l.b16 %v1207
        %v1503 = vunpack.c.l.b16 %v1208
        %v1504 = vunpack.c.l.b16 %v1209
        %v1505 = vunpack.c.l.b16 %v1210
        %v1506 = vunpack.c.l.b16 %v1211
        %v1507 = vunpack.c.l.b16 %v1212
        %v1508 = vunpack.c.l.b16 %v1213
        %v1509 = vunpack.c.l.b16 %v1214
        %v1510 = vunpack.c.l.b16 %v1215
        %v1511 = vunpack.c.l.b16 %v1216
        %v1512 = vunpack.c.l.b16 %v1217
        %v1513 = vunpack.c.l.b16 %v1218
        %v1514 = vunpack.c.l.b16 %v1219
        %v1515 = vunpack.c.l.b16 %v1220
        %v1516 = vunpack.c.l.b16 %v1221
        %v1517 = vunpack.c.l.b16 %v1222
        %v1518 = vunpack.c.l.b16 %v1223
        %v1519 = vunpack.c.l.b16 %v1224
        %v1520 = vunpack.c.l.b16 %v1225
        %v1521 = vunpack.c.l.b16 %v1226
        %v1522 = vunpack.c.l.b16 %v1227
        %v1523 = vunpack.c.l.b16 %v1228
        %v1524 = vunpack.c.l.b16 %v1229
        %v1525 = vunpack.c.l.b16 %v1230
        %v1526 = vunpack.c.l.b16 %v1231
        %v1527 = vunpack.c.l.b16 %v1232
        %v1528 = vunpack.c.l.b16 %v1233
        %v1529 = vunpack.c.l.b16 %v1234
        %v1530 = vunpack.c.l.b16 %v1235
        %v1531 = vunpack.c.l.b16 %v1236
        %v1532 = vunpack.c.l.b16 %v1237
        %v1533 = vunpack.c.l.b16 %v1238
        %v1534 = vunpack.c.l.b16 %v1239
        %v1535 = vunpack.c.l.b16 %v1240
        %v1536 = vunpack.c.l.b16 %v1241
        %v1537 = vunpack.c.l.b16 %v1242
        %v1538 = vunpack.c.l.b16 %v1243
        %v1539 = vunpack.c.l.b16 %v1244
        %v1540 = vunpack.c.l.b16 %v1245
        %v1541 = vunpack.c.l.b16 %v1246
        %v1542 = vunpack.c.l.b16 %v1247
        %v1543 = vunpack.c.l.b16 %v1248
        %v1544 = vunpack.c.l.b16 %v1249
        %v1545 = vunpack.c.l.b16 %v1250
        %v1546 = vunpack.c.l.b16 %v1251
        %v1547 = vunpack.c.l.b16 %v1252
        %v1548 = vunpack.c.l.b16 %v1253
        %v1549 = vunpack.c.l.b16 %v1254
        %v1550 = vunpack.c.l.b16 %v1255
        %v1551 = vunpack.c.l.b16 %v1256
        %v1552 = vunpack.c.l.b16 %v1257
        %v1553 = vunpack.c.l.b16 %v1258
        %v1554 = vunpack.c.l.b16 %v1259
        %v1555 = vunpack.c.l.b16 %v1260
        %v1556 = vunpack.c.l.b16 %v1261
        %v1557 = vunpack.c.l.b16 %v1262
        %v1558 = vunpack.c.l.b16 %v1263
        %v1559 = vunpack.c.l.b16 %v1264
        %v1560 = vunpack.c.l.b16 %v1265
        %v1561 = vunpack.c.l.b16 %v1266
        %v1562 = vunpack.c.l.b16 %v1267
        %v1563 = vunpack.c.l.b16 %v1268
        %v1564 = vunpack.c.l.b16 %v1269
        %v1565 = vunpack.c.l.b16 %v1270
        %v1566 = vunpack.c.l.b16 %v1271
        %v1567 = vunpack.c.l.b16 %v1272
        %v1568 = vunpack.c.l.b16 %v1273
        %v1569 = vunpack.c.l.b16 %v1274
        %v1570 = vunpack.c.l.b16 %v1275
        %v1571 = vunpack.c.l.b16 %v1276
        %v1572 = vunpack.c.l.b16 %v1277
        %v1573 = vunpack.c.l.b16 %v1278
        %v1574 = vunpack.c.l.b16 %v1279
        %v1575 = vunpack.c.l.b16 %v1280
        %v1576 = vunpack.c.l.b16 %v1281
        %v1577 = vunpack.c.l.b16 %v1282
        %v1578 = vunpack.c.l.b16 %v1283
        %v1579 = vunpack.c.l.b16 %v1284
        %v1580 = vunpack.c.l.b16 %v1285
        %v1581 = vunpack.c.l.b16 %v1286
        %v1582 = vunpack.c.l.b16 %v1287
        %v1583 = vunpack.c.l.b16 %v1288
        %v1584 = vunpack.c.l.b16 %v1289
        %v1585 = vunpack.c.l.b16 %v1290
        %v1586 = vunpack.c.l.b16 %v1291
        %v1587 = vunpack.c.l.b16 %v1292
        %v1588 = vunpack.c.l.b16 %v1293
        %v1589 = vunpack.c.l.b16 %v1294
        %v1590 = vunpack.c.l.b16 %v1295
        %v1591 = vunpack.c.l.b16 %v1296
        %v1592 = vunpack.c.l.b16 %v1297
        %v1593 = vunpack.c.l.b16 %v1298
        %v1594 = vunpack.c.l.b16 %v1299
        %v1595 = vunpack.c.l.b16 %v1300
        %v1596 = vunpack.c.l.b16 %v1301
        %v1597 = vunpack.c.l.b16 %v1302
        %v1598 = vunpack.c.l.b16 %v1303
        %v1599 = vunpack.c.l.b16 %v1304
        %v1600 = vunpack.c.l.b16 %v1305
        %v1601 = vunpack.c.l.b16 %v1306
        %v1602 = vunpack.c.l.b16 %v1307
        %v1603 = vunpack.c.l.b16 %v1308
        %v1604 = vpack.c.b16 %v1461, %v1460
        %v1605 = vpack.c.b16 %v1463, %v1462
        %v1606 = vpack.c.b16 %v1465, %v1464
        %v1607 = vpack.c.b16 %v1467, %v1466
        %v1608 = vpack.c.b16 %v1469, %v1468
        %v1609 = vpack.c.b16 %v1471, %v1470
        %v1610 = vpack.c.b16 %v1473, %v1472
        %v1611 = vpack.c.b16 %v1475, %v1474
        %v1612 = vpack.c.b16 %v1477, %v1476
        %v1613 = vpack.c.b16 %v1479, %v1478
        %v1614 = vpack.c.b16 %v1481, %v1480
        %v1615 = vpack.c.b16 %v1483, %v1482
        %v1616 = vpack.c.b16 %v1485, %v1484
        %v1617 = vpack.c.b16 %v1487, %v1486
        %v1618 = vpack.c.b16 %v1489, %v1488
        %v1619 = vpack.c.b16 %v1491, %v1490
        %v1620 = vpack.c.b16 %v1493, %v1492
        %v1621 = vpack.c.b16 %v1495, %v1494
        %v1622 = vpack.c.b16 %v1497, %v1496
        %v1623 = vpack.c.b16 %v1499, %v1498
        %v1624 = vpack.c.b16 %v1501, %v1500
        %v1625 = vpack.c.b16 %v1503, %v1502
        %v1626 = vpack.c.b16 %v1505, %v1504
        %v1627 = vpack.c.b16 %v1507, %v1506
        %v1628 = vpack.c.b16 %v1509, %v1508
        %v1629 = vpack.c.b16 %v1511, %v1510
        %v1630 = vpack.c.b16 %v1513, %v1512
        %v1631 = vpack.c.b16 %v1515, %v1514
        %v1632 = vpack.c.b16 %v1517, %v1516
        %v1633 = vpack.c.b16 %v1519, %v1518
        %v1634 = vpack.c.b16 %v1521, %v1520
        %v1635 = vpack.c.b16 %v1523, %v1522
        %v1636 = vpack.c.b16 %v1525, %v1524
        %v1637 = vpack.c.b16 %v1527, %v1526
        %v1638 = vpack.c.b16 %v1529, %v1528
        %v1639 = vpack.c.b16 %v1531, %v1530
        %v1640 = vpack.c.b16 %v1533, %v1532
        %v1641 = vpack.c.b16 %v1535, %v1534
        %v1642 = vpack.c.b16 %v1537, %v1536
        %v1643 = vpack.c.b16 %v1539, %v1538
        %v1644 = vpack.c.b16 %v1541, %v1540
        %v1645 = vpack.c.b16 %v1543, %v1542
        %v1646 = vpack.c.b16 %v1545, %v1544
        %v1647 = vpack.c.b16 %v1547, %v1546
        %v1648 = vpack.c.b16 %v1549, %v1548
        %v1649 = vpack.c.b16 %v1551, %v1550
        %v1650 = vpack.c.b16 %v1553, %v1552
        %v1651 = vpack.c.b16 %v1555, %v1554
        %v1652 = vpack.c.b16 %v1557, %v1556
        %v1653 = vpack.c.b16 %v1559, %v1558
        %v1654 = vpack.c.b16 %v1561, %v1560
        %v1655 = vpack.c.b16 %v1563, %v1562
        %v1656 = vpack.c.b16 %v1565, %v1564
        %v1657 = vpack.c.b16 %v1567, %v1566
        %v1658 = vpack.c.b16 %v1569, %v1568
        %v1659 = vpack.c.b16 %v1571, %v1570
        %v1660 = vpack.c.b16 %v1573, %v1572
        %v1661 = vpack.c.b16 %v1575, %v1574
        %v1662 = vpack.c.b16 %v1577, %v1576
        %v1663 = vpack.c.b16 %v1579, %v1578
        %v1664 = vpack.c.b16 %v1581, %v1580
        %v1665 = vpack.c.b16 %v1583, %v1582
        %v1666 = vpack.c.b16 %v1585, %v1584
        %v1667 = vpack.c.b16 %v1587, %v1586
        %v1668 = vpack.c.b16 %v1589, %v1588
        %v1669 = vpack.c.b16 %v1591, %v1590
        %v1670 = vpack.c.b16 %v1593, %v1592
        %v1671 = vpack.c.b16 %v1595, %v1594
        %v1672 = vpack.c.b16 %v1597, %v1596
        %v1673 = vpack.c.b16 %v1599, %v1598
        %v1674 = vpack.c.b16 %v1601, %v1600
        %v1675 = vpack.c.b16 %v1603, %v1602
        %1748 = vmatprep.subr.bf16.mxu0 0
        %1749 = vmatpush1.bf16.msra.mxu0 %v1604
        %1750 = vmatprep.subr.bf16.mxu0 0
        %1751 = vmatpush1.bf16.msra.mxu0 %v1605
        %1752 = vmatprep.subr.bf16.mxu0 0
        %1753 = vmatpush1.bf16.msra.mxu0 %v1606
        %1754 = vmatprep.subr.bf16.mxu0 0
        %1755 = vmatpush1.bf16.msra.mxu0 %v1607
        %1756 = vmatprep.subr.bf16.mxu0 0
        %1757 = vmatpush1.bf16.msra.mxu0 %v1608
        %1758 = vmatprep.subr.bf16.mxu0 0
        %1759 = vmatpush1.bf16.msra.mxu0 %v1609
        %1760 = vmatprep.subr.bf16.mxu0 0
        %1761 = vmatpush1.bf16.msra.mxu0 %v1610
        %1762 = vmatprep.subr.bf16.mxu0 0
        %1763 = vmatpush1.bf16.msra.mxu0 %v1611
        %1764 = vmatprep.subr.bf16.mxu0 0
        %1765 = vmatpush1.bf16.msra.mxu0 %v1612
        %1766 = vmatprep.subr.bf16.mxu0 0
        %1767 = vmatpush1.bf16.msra.mxu0 %v1613
        %1768 = vmatprep.subr.bf16.mxu0 0
        %1769 = vmatpush1.bf16.msra.mxu0 %v1614
        %1770 = vmatprep.subr.bf16.mxu0 0
        %1771 = vmatpush1.bf16.msra.mxu0 %v1615
        %1772 = vmatprep.subr.bf16.mxu0 0
        %1773 = vmatpush1.bf16.msra.mxu0 %v1616
        %1774 = vmatprep.subr.bf16.mxu0 0
        %1775 = vmatpush1.bf16.msra.mxu0 %v1617
        %1776 = vmatprep.subr.bf16.mxu0 0
        %1777 = vmatpush1.bf16.msra.mxu0 %v1618
        %1778 = vmatprep.subr.bf16.mxu0 0
        %1779 = vmatpush1.bf16.msra.mxu0 %v1619
        %1780 = vmatprep.mubr.bf16.mxu0 %v1130
        %1781 = vmatmul.mubr.bf16.gmra.mrb[0].mxu0 %v1129
        %v1782 = vpop.f32.mrb[0].mxu0
        %v1783 = vadd.f32 %v1314, %v1782
        %v1784 = vpop.f32.mrb[0].mxu0
        %v1785 = vpop.f32.mrb[0].mxu0
        %v1786 = vadd.f32 %v1314, %v1785
        %v1787 = vpop.f32.mrb[0].mxu0
        %1788 = vmatprep.mubr.bf16.mxu0 %v1139
        %1789 = vmatmul.mubr.bf16.gmra.mrb[0].mxu0 %v1138
        %v1790 = vpop.f32.mrb[0].mxu0
        %v1791 = vadd.f32 %v1314, %v1790
        %v1792 = vpop.f32.mrb[0].mxu0
        %v1793 = vpop.f32.mrb[0].mxu0
        %v1794 = vadd.f32 %v1314, %v1793
        %v1795 = vpop.f32.mrb[0].mxu0
        %1796 = vmatprep.mubr.bf16.mxu0 %v1148
        %1797 = vmatmul.mubr.bf16.gmra.mrb[0].mxu0 %v1147
        %v1798 = vpop.f32.mrb[0].mxu0
        %v1799 = vadd.f32 %v1314, %v1798
        %v1800 = vpop.f32.mrb[0].mxu0
        %v1801 = vpop.f32.mrb[0].mxu0
        %v1802 = vadd.f32 %v1314, %v1801
        %v1803 = vpop.f32.mrb[0].mxu0
        %1804 = vmatprep.mubr.bf16.mxu0 %v1157
        %1805 = vmatmul.mubr.bf16.gmra.mrb[0].mxu0 %v1156
        %v1806 = vpop.f32.mrb[0].mxu0
        %v1807 = vadd.f32 %v1314, %v1806
        %v1808 = vpop.f32.mrb[0].mxu0
        %v1809 = vpop.f32.mrb[0].mxu0
        %v1810 = vadd.f32 %v1314, %v1809
        %v1811 = vpop.f32.mrb[0].mxu0
        %1812 = vdwg.mxu0
        %1813 = vmatprep.subr.bf16.mxu0 0
        %1814 = vmatpush1.bf16.msra.mxu0 %v1620
        %1815 = vmatprep.subr.bf16.mxu0 0
        %1816 = vmatpush1.bf16.msra.mxu0 %v1621
        %1817 = vmatprep.subr.bf16.mxu0 0
        %1818 = vmatpush1.bf16.msra.mxu0 %v1622
        %1819 = vmatprep.subr.bf16.mxu0 0
        %1820 = vmatpush1.bf16.msra.mxu0 %v1623
        %1821 = vmatprep.subr.bf16.mxu0 0
        %1822 = vmatpush1.bf16.msra.mxu0 %v1624
        %1823 = vmatprep.subr.bf16.mxu0 0
        %1824 = vmatpush1.bf16.msra.mxu0 %v1625
        %1825 = vmatprep.subr.bf16.mxu0 0
        %1826 = vmatpush1.bf16.msra.mxu0 %v1626
        %1827 = vmatprep.subr.bf16.mxu0 0
        %1828 = vmatpush1.bf16.msra.mxu0 %v1627
        %1829 = vmatprep.subr.bf16.mxu0 0
        %1830 = vmatpush1.bf16.msra.mxu0 %v1628
        %1831 = vmatprep.subr.bf16.mxu0 0
        %1832 = vmatpush1.bf16.msra.mxu0 %v1629
        %1833 = vmatprep.subr.bf16.mxu0 0
        %1834 = vmatpush1.bf16.msra.mxu0 %v1630
        %1835 = vmatprep.subr.bf16.mxu0 0
        %1836 = vmatpush1.bf16.msra.mxu0 %v1631
        %1837 = vmatprep.subr.bf16.mxu0 0
        %1838 = vmatpush1.bf16.msra.mxu0 %v1632
        %1839 = vmatprep.subr.bf16.mxu0 0
        %1840 = vmatpush1.bf16.msra.mxu0 %v1633
        %1841 = vmatprep.subr.bf16.mxu0 0
        %1842 = vmatpush1.bf16.msra.mxu0 %v1634
        %1843 = vmatprep.subr.bf16.mxu0 0
        %1844 = vmatpush1.bf16.msra.mxu0 %v1635
        %1845 = vmatprep.mubr.bf16.mxu0 %v1132
        %1846 = vmatmul.mubr.bf16.gmra.mrb[0].mxu0 %v1131
        %v1847 = vpop.f32.mrb[0].mxu0
        %v1848 = vadd.f32 %v1783, %v1847
        %v1849 = vpop.f32.mrb[0].mxu0
        %v1850 = vpop.f32.mrb[0].mxu0
        %v1851 = vadd.f32 %v1786, %v1850
        %v1852 = vpop.f32.mrb[0].mxu0
        %1853 = vmatprep.mubr.bf16.mxu0 %v1141
        %1854 = vmatmul.mubr.bf16.gmra.mrb[0].mxu0 %v1140
        %v1855 = vpop.f32.mrb[0].mxu0
        %v1856 = vadd.f32 %v1791, %v1855
        %v1857 = vpop.f32.mrb[0].mxu0
        %v1858 = vpop.f32.mrb[0].mxu0
        %v1859 = vadd.f32 %v1794, %v1858
        %v1860 = vpop.f32.mrb[0].mxu0
        %1861 = vmatprep.mubr.bf16.mxu0 %v1150
        %1862 = vmatmul.mubr.bf16.gmra.mrb[0].mxu0 %v1149
        %v1863 = vpop.f32.mrb[0].mxu0
        %v1864 = vadd.f32 %v1799, %v1863
        %v1865 = vpop.f32.mrb[0].mxu0
        %v1866 = vpop.f32.mrb[0].mxu0
        %v1867 = vadd.f32 %v1802, %v1866
        %v1868 = vpop.f32.mrb[0].mxu0
        %1869 = vmatprep.mubr.bf16.mxu0 %v1159
        %1870 = vmatmul.mubr.bf16.gmra.mrb[0].mxu0 %v1158
        %v1871 = vpop.f32.mrb[0].mxu0
        %v1872 = vadd.f32 %v1807, %v1871
        %v1873 = vpop.f32.mrb[0].mxu0
        %v1874 = vpop.f32.mrb[0].mxu0
        %v1875 = vadd.f32 %v1810, %v1874
        %v1876 = vpop.f32.mrb[0].mxu0
        %1877 = vdwg.mxu0
        %1878 = vmatprep.subr.bf16.mxu0 0
        %1879 = vmatpush1.bf16.msra.mxu0 %v1636
        %1880 = vmatprep.subr.bf16.mxu0 0
        %1881 = vmatpush1.bf16.msra.mxu0 %v1637
        %1882 = vmatprep.subr.bf16.mxu0 0
        %1883 = vmatpush1.bf16.msra.mxu0 %v1638
        %1884 = vmatprep.subr.bf16.mxu0 0
        %1885 = vmatpush1.bf16.msra.mxu0 %v1639
        %1886 = vmatprep.subr.bf16.mxu0 0
        %1887 = vmatpush1.bf16.msra.mxu0 %v1640
        %1888 = vmatprep.subr.bf16.mxu0 0
        %1889 = vmatpush1.bf16.msra.mxu0 %v1641
        %1890 = vmatprep.subr.bf16.mxu0 0
        %1891 = vmatpush1.bf16.msra.mxu0 %v1642
        %1892 = vmatprep.subr.bf16.mxu0 0
        %1893 = vmatpush1.bf16.msra.mxu0 %v1643
        %1894 = vmatprep.subr.bf16.mxu0 0
        %1895 = vmatpush1.bf16.msra.mxu0 %v1644
        %1896 = vmatprep.subr.bf16.mxu0 0
        %1897 = vmatpush1.bf16.msra.mxu0 %v1645
        %1898 = vmatprep.subr.bf16.mxu0 0
        %1899 = vmatpush1.bf16.msra.mxu0 %v1646
        %1900 = vmatprep.subr.bf16.mxu0 0
        %1901 = vmatpush1.bf16.msra.mxu0 %v1647
        %1902 = vmatprep.subr.bf16.mxu0 0
        %1903 = vmatpush1.bf16.msra.mxu0 %v1648
        %1904 = vmatprep.subr.bf16.mxu0 0
        %1905 = vmatpush1.bf16.msra.mxu0 %v1649
        %1906 = vmatprep.subr.bf16.mxu0 0
        %1907 = vmatpush1.bf16.msra.mxu0 %v1650
        %1908 = vmatprep.subr.bf16.mxu0 0
        %1909 = vmatpush1.bf16.msra.mxu0 %v1651
        %1910 = vmatprep.mubr.bf16.mxu0 %v1134
        %1911 = vmatmul.mubr.bf16.gmra.mrb[0].mxu0 %v1133
        %v1912 = vpop.f32.mrb[0].mxu0
        %v1913 = vadd.f32 %v1848, %v1912
        %v1914 = vpop.f32.mrb[0].mxu0
        %v1915 = vpop.f32.mrb[0].mxu0
        %v1916 = vadd.f32 %v1851, %v1915
        %v1917 = vpop.f32.mrb[0].mxu0
        %1918 = vmatprep.mubr.bf16.mxu0 %v1143
        %1919 = vmatmul.mubr.bf16.gmra.mrb[0].mxu0 %v1142
        %v1920 = vpop.f32.mrb[0].mxu0
        %v1921 = vadd.f32 %v1856, %v1920
        %v1922 = vpop.f32.mrb[0].mxu0
        %v1923 = vpop.f32.mrb[0].mxu0
        %v1924 = vadd.f32 %v1859, %v1923
        %v1925 = vpop.f32.mrb[0].mxu0
        %1926 = vmatprep.mubr.bf16.mxu0 %v1152
        %1927 = vmatmul.mubr.bf16.gmra.mrb[0].mxu0 %v1151
        %v1928 = vpop.f32.mrb[0].mxu0
        %v1929 = vadd.f32 %v1864, %v1928
        %v1930 = vpop.f32.mrb[0].mxu0
        %v1931 = vpop.f32.mrb[0].mxu0
        %v1932 = vadd.f32 %v1867, %v1931
        %v1933 = vpop.f32.mrb[0].mxu0
        %1934 = vmatprep.mubr.bf16.mxu0 %v1161
        %1935 = vmatmul.mubr.bf16.gmra.mrb[0].mxu0 %v1160
        %v1936 = vpop.f32.mrb[0].mxu0
        %v1937 = vadd.f32 %v1872, %v1936
        %v1938 = vpop.f32.mrb[0].mxu0
        %v1939 = vpop.f32.mrb[0].mxu0
        %v1940 = vadd.f32 %v1875, %v1939
        %v1941 = vpop.f32.mrb[0].mxu0
        %1942 = vdwg.mxu0
        %1943 = vmatprep.subr.bf16.mxu0 0
        %1944 = vmatpush1.bf16.msra.mxu0 %v1652
        %1945 = vmatprep.subr.bf16.mxu0 0
        %1946 = vmatpush1.bf16.msra.mxu0 %v1653
        %1947 = vmatprep.subr.bf16.mxu0 0
        %1948 = vmatpush1.bf16.msra.mxu0 %v1654
        %1949 = vmatprep.subr.bf16.mxu0 0
        %1950 = vmatpush1.bf16.msra.mxu0 %v1655
        %1951 = vmatprep.subr.bf16.mxu0 0
        %1952 = vmatpush1.bf16.msra.mxu0 %v1656
        %1953 = vmatprep.subr.bf16.mxu0 0
        %1954 = vmatpush1.bf16.msra.mxu0 %v1657
        %1955 = vmatprep.subr.bf16.mxu0 0
        %1956 = vmatpush1.bf16.msra.mxu0 %v1658
        %1957 = vmatprep.subr.bf16.mxu0 0
        %1958 = vmatpush1.bf16.msra.mxu0 %v1659
        %1959 = vmatprep.subr.bf16.mxu0 0
        %1960 = vmatpush1.bf16.msra.mxu0 %v1660
        %1961 = vmatprep.subr.bf16.mxu0 0
        %1962 = vmatpush1.bf16.msra.mxu0 %v1661
        %1963 = vmatprep.subr.bf16.mxu0 0
        %1964 = vmatpush1.bf16.msra.mxu0 %v1662
        %1965 = vmatprep.subr.bf16.mxu0 0
        %1966 = vmatpush1.bf16.msra.mxu0 %v1663
        %1967 = vmatprep.subr.bf16.mxu0 0
        %1968 = vmatpush1.bf16.msra.mxu0 %v1664
        %1969 = vmatprep.subr.bf16.mxu0 0
        %1970 = vmatpush1.bf16.msra.mxu0 %v1665
        %1971 = vmatprep.subr.bf16.mxu0 0
        %1972 = vmatpush1.bf16.msra.mxu0 %v1666
        %1973 = vmatprep.subr.bf16.mxu0 0
        %1974 = vmatpush1.bf16.msra.mxu0 %v1667
        %1975 = vmatprep.mubr.bf16.mxu0 %v1136
        %1976 = vmatmul.mubr.bf16.gmra.mrb[0].mxu0 %v1135
        %v1977 = vpop.f32.mrb[0].mxu0
        %v1978 = vadd.f32 %v1913, %v1977
        %v1979 = vpop.f32.mrb[0].mxu0
        %v1980 = vpop.f32.mrb[0].mxu0
        %v1981 = vadd.f32 %v1916, %v1980
        %v1982 = vpop.f32.mrb[0].mxu0
        %1983 = vmatprep.mubr.bf16.mxu0 %v1145
        %1984 = vmatmul.mubr.bf16.gmra.mrb[0].mxu0 %v1144
        %v1985 = vpop.f32.mrb[0].mxu0
        %v1986 = vadd.f32 %v1921, %v1985
        %v1987 = vpop.f32.mrb[0].mxu0
        %v1988 = vpop.f32.mrb[0].mxu0
        %v1989 = vadd.f32 %v1924, %v1988
        %v1990 = vpop.f32.mrb[0].mxu0
        %1991 = vmatprep.mubr.bf16.mxu0 %v1154
        %1992 = vmatmul.mubr.bf16.gmra.mrb[0].mxu0 %v1153
        %v1993 = vpop.f32.mrb[0].mxu0
        %v1994 = vadd.f32 %v1929, %v1993
        %v1995 = vpop.f32.mrb[0].mxu0
        %v1996 = vpop.f32.mrb[0].mxu0
        %v1997 = vadd.f32 %v1932, %v1996
        %v1998 = vpop.f32.mrb[0].mxu0
        %1999 = vmatprep.mubr.bf16.mxu0 %v1163
        %2000 = vmatmul.mubr.bf16.gmra.mrb[0].mxu0 %v1162
        %v2001 = vpop.f32.mrb[0].mxu0
        %v2002 = vadd.f32 %v1937, %v2001
        %v2003 = vpop.f32.mrb[0].mxu0
        %v2004 = vpop.f32.mrb[0].mxu0
        %v2005 = vadd.f32 %v1940, %v2004
        %v2006 = vpop.f32.mrb[0].mxu0
        %2007 = vdwg.mxu0
        %2008 = vmatprep.subr.bf16.mxu0 0
        %2009 = vmatpush1.bf16.msra.mxu0 %v1668
        %2010 = vmatprep.subr.bf16.mxu0 0
        %2011 = vmatpush1.bf16.msra.mxu0 %v1669
        %2012 = vmatprep.subr.bf16.mxu0 0
        %2013 = vmatpush1.bf16.msra.mxu0 %v1670
        %2014 = vmatprep.subr.bf16.mxu0 0
        %2015 = vmatpush1.bf16.msra.mxu0 %v1671
        %2016 = vmatprep.subr.bf16.mxu0 0
        %2017 = vmatpush1.bf16.msra.mxu0 %v1672
        %2018 = vmatprep.subr.bf16.mxu0 0
        %2019 = vmatpush1.bf16.msra.mxu0 %v1673
        %2020 = vmatprep.subr.bf16.mxu0 0
        %2021 = vmatpush1.bf16.msra.mxu0 %v1674
        %2022 = vmatprep.subr.bf16.mxu0 0
        %2023 = vmatpush1.bf16.msra.mxu0 %v1675
        %2024 = vmatprep.subr.bf16.mxu0 0
        %2025 = vmatpush1.bf16.msra.mxu0 0
        %2026 = vmatprep.subr.bf16.mxu0 0
        %2027 = vmatpush1.bf16.msra.mxu0 0
        %2028 = vmatprep.subr.bf16.mxu0 0
        %2029 = vmatpush1.bf16.msra.mxu0 0
        %2030 = vmatprep.subr.bf16.mxu0 0
        %2031 = vmatpush1.bf16.msra.mxu0 0
        %2032 = vmatprep.subr.bf16.mxu0 0
        %2033 = vmatpush1.bf16.msra.mxu0 0
        %2034 = vmatprep.subr.bf16.mxu0 0
        %2035 = vmatpush1.bf16.msra.mxu0 0
        %2036 = vmatprep.subr.bf16.mxu0 0
        %2037 = vmatpush1.bf16.msra.mxu0 0
        %2038 = vmatprep.subr.bf16.mxu0 0
        %2039 = vmatpush1.bf16.msra.mxu0 0
        %2040 = vmatprep.mubr.bf16.mxu0 0
        %2041 = vmatmul.mubr.bf16.gmra.mrb[0].mxu0 %v1137
        %v2042 = vpop.f32.mrb[0].mxu0
        %v2043 = vadd.f32 %v1978, %v2042
        %v2044 = vpop.f32.mrb[0].mxu0
        %v2045 = vpop.f32.mrb[0].mxu0
        %v2046 = vadd.f32 %v1981, %v2045
        %v2047 = vpop.f32.mrb[0].mxu0
        %2048 = vmatprep.mubr.bf16.mxu0 0
        %2049 = vmatmul.mubr.bf16.gmra.mrb[0].mxu0 %v1146
        %v2050 = vpop.f32.mrb[0].mxu0
        %v2051 = vadd.f32 %v1986, %v2050
        %v2052 = vpop.f32.mrb[0].mxu0
        %v2053 = vpop.f32.mrb[0].mxu0
        %v2054 = vadd.f32 %v1989, %v2053
        %v2055 = vpop.f32.mrb[0].mxu0
        %2056 = vmatprep.mubr.bf16.mxu0 0
        %2057 = vmatmul.mubr.bf16.gmra.mrb[0].mxu0 %v1155
        %v2058 = vpop.f32.mrb[0].mxu0
        %v2059 = vadd.f32 %v1994, %v2058
        %v2060 = vpop.f32.mrb[0].mxu0
        %v2061 = vpop.f32.mrb[0].mxu0
        %v2062 = vadd.f32 %v1997, %v2061
        %v2063 = vpop.f32.mrb[0].mxu0
        %2064 = vmatprep.mubr.bf16.mxu0 0
        %2065 = vmatmul.mubr.bf16.gmra.mrb[0].mxu0 %v1164
        %v2066 = vpop.f32.mrb[0].mxu0
        %v2067 = vadd.f32 %v2002, %v2066
        %v2068 = vpop.f32.mrb[0].mxu0
        %v2069 = vpop.f32.mrb[0].mxu0
        %v2070 = vadd.f32 %v2005, %v2069
        %v2071 = vpop.f32.mrb[0].mxu0
        %2072 = vdwg.mxu0
        %v2073 = vmax.f32 %v2043, 0.0
        %v2074 = vmax.f32 %v2046, 0.0
        %v2075 = vmax.f32 %v2051, 0.0
        %v2076 = vmax.f32 %v2054, 0.0
        %v2077 = vmax.f32 %v2059, 0.0
        %v2078 = vmax.f32 %v2062, 0.0
        %v2079 = vmax.f32 %v2067, 0.0
        %v2080 = vmax.f32 %v2070, 0.0
        %v2081 = vpack.c.bf16 %v2074, %v2073
        %v2082 = vpack.c.bf16 %v2076, %v2075
        %v2083 = vpack.c.bf16 %v2078, %v2077
        %v2084 = vpack.c.bf16 %v2080, %v2079
        %v2085 = vld [vmem:[%s383] sm:$0xf]
        %v2086 = vld [vmem:[%s383 + $0x4] sm:$0xf]
        %v2087 = vld [vmem:[%s383 + $0x8] sm:$0xf]
        %v2088 = vld [vmem:[%s383 + $0xc] sm:$0xf]
        %v2089 = vld [vmem:[%s383 + $0x10] sm:$0xf]
        %v2090 = vld [vmem:[%s383 + $0x14] sm:$0xf]
        %v2091 = vld [vmem:[%s383 + $0x18] sm:$0xf]
        %v2092 = vld [vmem:[%s383 + $0x1c] sm:$0xf]
        %v2101 = vunpack.c.l.b16 %v2085
        %v2102 = vunpack.c.l.b16 %v2086
        %v2103 = vunpack.c.l.b16 %v2087
        %v2104 = vunpack.c.l.b16 %v2088
        %v2105 = vunpack.c.l.b16 %v2089
        %v2106 = vunpack.c.l.b16 %v2090
        %v2107 = vunpack.c.l.b16 %v2091
        %v2108 = vunpack.c.l.b16 %v2092
        %v2109 = vpack.c.b16 %v2102, %v2101
        %v2110 = vpack.c.b16 %v2104, %v2103
        %v2111 = vpack.c.b16 %v2106, %v2105
        %v2112 = vpack.c.b16 %v2108, %v2107
        %v2117 = vld [vmem:[#allocation15] sm:$0xf]
        %v2118 = vld [vmem:[#allocation15 + $0x4] sm:$0xf]
        %v2119 = vld [vmem:[#allocation15 + $0x8] sm:$0xf]
        %v2120 = vld [vmem:[#allocation15 + $0xc] sm:$0xf]
        %v2121 = vld [vmem:[#allocation15 + $0x10] sm:$0xf]
        %v2122 = vld [vmem:[#allocation15 + $0x14] sm:$0xf]
        %v2123 = vld [vmem:[#allocation15 + $0x18] sm:$0xf]
        %v2124 = vld [vmem:[#allocation15 + $0x1c] sm:$0xf]
        %v2125 = vld [vmem:[#allocation15 + $0x20] sm:$0xf]
        %v2126 = vld [vmem:[#allocation15 + $0x24] sm:$0xf]
        %v2127 = vld [vmem:[#allocation15 + $0x28] sm:$0xf]
        %v2128 = vld [vmem:[#allocation15 + $0x2c] sm:$0xf]
        %v2129 = vld [vmem:[#allocation15 + $0x30] sm:$0xf]
        %v2130 = vld [vmem:[#allocation15 + $0x34] sm:$0xf]
        %v2131 = vld [vmem:[#allocation15 + $0x38] sm:$0xf]
        %v2132 = vld [vmem:[#allocation15 + $0x3c] sm:$0xf]
        %v2133 = vld [vmem:[#allocation15 + $0x40] sm:$0xf]
        %v2134 = vld [vmem:[#allocation15 + $0x44] sm:$0xf]
        %v2135 = vld [vmem:[#allocation15 + $0x48] sm:$0xf]
        %v2136 = vld [vmem:[#allocation15 + $0x4c] sm:$0xf]
        %v2137 = vld [vmem:[#allocation15 + $0x50] sm:$0xf]
        %v2138 = vld [vmem:[#allocation15 + $0x54] sm:$0xf]
        %v2139 = vld [vmem:[#allocation15 + $0x58] sm:$0xf]
        %v2140 = vld [vmem:[#allocation15 + $0x5c] sm:$0xf]
        %v2141 = vld [vmem:[#allocation15 + $0x60] sm:$0xf]
        %v2142 = vld [vmem:[#allocation15 + $0x64] sm:$0xf]
        %v2143 = vld [vmem:[#allocation15 + $0x68] sm:$0xf]
        %v2144 = vld [vmem:[#allocation15 + $0x6c] sm:$0xf]
        %v2145 = vld [vmem:[#allocation15 + $0x70] sm:$0xf]
        %v2146 = vld [vmem:[#allocation15 + $0x74] sm:$0xf]
        %v2147 = vld [vmem:[#allocation15 + $0x78] sm:$0xf]
        %v2148 = vld [vmem:[#allocation15 + $0x7c] sm:$0xf]
        %v2149 = vld [vmem:[#allocation16] sm:$0x1]
        %v2151 = vlaneseq
        %v2152 = vshrl.u32 %v2151, 7
        %v2153 = vsub.s32 0, %v2152
        %v2154 = vrot.slane %v2149, %v2153
        %v2188 = vunpack.c.l.b16 %v2117
        %v2189 = vunpack.c.l.b16 %v2118
        %v2190 = vunpack.c.l.b16 %v2119
        %v2191 = vunpack.c.l.b16 %v2120
        %v2192 = vunpack.c.l.b16 %v2121
        %v2193 = vunpack.c.l.b16 %v2122
        %v2194 = vunpack.c.l.b16 %v2123
        %v2195 = vunpack.c.l.b16 %v2124
        %v2196 = vunpack.c.l.b16 %v2125
        %v2197 = vunpack.c.l.b16 %v2126
        %v2198 = vunpack.c.l.b16 %v2127
        %v2199 = vunpack.c.l.b16 %v2128
        %v2200 = vunpack.c.l.b16 %v2129
        %v2201 = vunpack.c.l.b16 %v2130
        %v2202 = vunpack.c.l.b16 %v2131
        %v2203 = vunpack.c.l.b16 %v2132
        %v2204 = vunpack.c.l.b16 %v2133
        %v2205 = vunpack.c.l.b16 %v2134
        %v2206 = vunpack.c.l.b16 %v2135
        %v2207 = vunpack.c.l.b16 %v2136
        %v2208 = vunpack.c.l.b16 %v2137
        %v2209 = vunpack.c.l.b16 %v2138
        %v2210 = vunpack.c.l.b16 %v2139
        %v2211 = vunpack.c.l.b16 %v2140
        %v2212 = vunpack.c.l.b16 %v2141
        %v2213 = vunpack.c.l.b16 %v2142
        %v2214 = vunpack.c.l.b16 %v2143
        %v2215 = vunpack.c.l.b16 %v2144
        %v2216 = vunpack.c.l.b16 %v2145
        %v2217 = vunpack.c.l.b16 %v2146
        %v2218 = vunpack.c.l.b16 %v2147
        %v2219 = vunpack.c.l.b16 %v2148
        %v2220 = vpack.c.b16 %v2189, %v2188
        %v2221 = vpack.c.b16 %v2191, %v2190
        %v2222 = vpack.c.b16 %v2193, %v2192
        %v2223 = vpack.c.b16 %v2195, %v2194
        %v2224 = vpack.c.b16 %v2197, %v2196
        %v2225 = vpack.c.b16 %v2199, %v2198
        %v2226 = vpack.c.b16 %v2201, %v2200
        %v2227 = vpack.c.b16 %v2203, %v2202
        %v2228 = vpack.c.b16 %v2205, %v2204
        %v2229 = vpack.c.b16 %v2207, %v2206
        %v2230 = vpack.c.b16 %v2209, %v2208
        %v2231 = vpack.c.b16 %v2211, %v2210
        %v2232 = vpack.c.b16 %v2213, %v2212
        %v2233 = vpack.c.b16 %v2215, %v2214
        %v2234 = vpack.c.b16 %v2217, %v2216
        %v2235 = vpack.c.b16 %v2219, %v2218
        %2252 = vmatprep.subr.bf16.mxu0 0
        %2253 = vmatpush1.bf16.msra.mxu0 %v2220
        %2254 = vmatprep.subr.bf16.mxu0 0
        %2255 = vmatpush1.bf16.msra.mxu0 %v2221
        %2256 = vmatprep.subr.bf16.mxu0 0
        %2257 = vmatpush1.bf16.msra.mxu0 %v2222
        %2258 = vmatprep.subr.bf16.mxu0 0
        %2259 = vmatpush1.bf16.msra.mxu0 %v2223
        %2260 = vmatprep.subr.bf16.mxu0 0
        %2261 = vmatpush1.bf16.msra.mxu0 %v2224
        %2262 = vmatprep.subr.bf16.mxu0 0
        %2263 = vmatpush1.bf16.msra.mxu0 %v2225
        %2264 = vmatprep.subr.bf16.mxu0 0
        %2265 = vmatpush1.bf16.msra.mxu0 %v2226
        %2266 = vmatprep.subr.bf16.mxu0 0
        %2267 = vmatpush1.bf16.msra.mxu0 %v2227
        %2268 = vmatprep.subr.bf16.mxu0 0
        %2269 = vmatpush1.bf16.msra.mxu0 %v2228
        %2270 = vmatprep.subr.bf16.mxu0 0
        %2271 = vmatpush1.bf16.msra.mxu0 %v2229
        %2272 = vmatprep.subr.bf16.mxu0 0
        %2273 = vmatpush1.bf16.msra.mxu0 %v2230
        %2274 = vmatprep.subr.bf16.mxu0 0
        %2275 = vmatpush1.bf16.msra.mxu0 %v2231
        %2276 = vmatprep.subr.bf16.mxu0 0
        %2277 = vmatpush1.bf16.msra.mxu0 %v2232
        %2278 = vmatprep.subr.bf16.mxu0 0
        %2279 = vmatpush1.bf16.msra.mxu0 %v2233
        %2280 = vmatprep.subr.bf16.mxu0 0
        %2281 = vmatpush1.bf16.msra.mxu0 %v2234
        %2282 = vmatprep.subr.bf16.mxu0 0
        %2283 = vmatpush1.bf16.msra.mxu0 %v2235
        %2284 = vmatprep.mubr.bf16.mxu0 %v2109
        %2285 = vmatmul.mubr.bf16.gmra.mrb[0].mxu0 %v2081
        %v2286 = vpop.f32.mrb[0].mxu0
        %v2287 = vadd.f32 %v2154, %v2286
        %v2288 = vpop.f32.mrb[0].mxu0
        %v2289 = vpop.f32.mrb[0].mxu0
        %v2290 = vadd.f32 %v2154, %v2289
        %v2291 = vpop.f32.mrb[0].mxu0
        %2292 = vmatprep.mubr.bf16.mxu0 %v2110
        %2293 = vmatmul.mubr.bf16.gmra.mrb[0].mxu0 %v2082
        %v2294 = vpop.f32.mrb[0].mxu0
        %v2295 = vadd.f32 %v2154, %v2294
        %v2296 = vpop.f32.mrb[0].mxu0
        %v2297 = vpop.f32.mrb[0].mxu0
        %v2298 = vadd.f32 %v2154, %v2297
        %v2299 = vpop.f32.mrb[0].mxu0
        %2300 = vmatprep.mubr.bf16.mxu0 %v2111
        %2301 = vmatmul.mubr.bf16.gmra.mrb[0].mxu0 %v2083
        %v2302 = vpop.f32.mrb[0].mxu0
        %v2303 = vadd.f32 %v2154, %v2302
        %v2304 = vpop.f32.mrb[0].mxu0
        %v2305 = vpop.f32.mrb[0].mxu0
        %v2306 = vadd.f32 %v2154, %v2305
        %v2307 = vpop.f32.mrb[0].mxu0
        %2308 = vmatprep.mubr.bf16.mxu0 %v2112
        %2309 = vmatmul.mubr.bf16.gmra.mrb[0].mxu0 %v2084
        %v2310 = vpop.f32.mrb[0].mxu0
        %v2311 = vadd.f32 %v2154, %v2310
        %v2312 = vpop.f32.mrb[0].mxu0
        %v2313 = vpop.f32.mrb[0].mxu0
        %v2314 = vadd.f32 %v2154, %v2313
        %v2315 = vpop.f32.mrb[0].mxu0
        %2316 = vdwg.mxu0
        %v2317 = vmax.f32 %v2287, 0.0
        %v2318 = vmax.f32 %v2290, 0.0
        %v2319 = vmax.f32 %v2295, 0.0
        %v2320 = vmax.f32 %v2298, 0.0
        %v2321 = vmax.f32 %v2303, 0.0
        %v2322 = vmax.f32 %v2306, 0.0
        %v2323 = vmax.f32 %v2311, 0.0
        %v2324 = vmax.f32 %v2314, 0.0
        %2325 = vst [vmem:[%s444] sm:$0xff] %v2317
        %2326 = vst [vmem:[%s444 + $0x8] sm:$0xff] %v2318
        %2327 = vst [vmem:[%s444 + $0x10] sm:$0xff] %v2319
        %2328 = vst [vmem:[%s444 + $0x18] sm:$0xff] %v2320
        %2329 = vst [vmem:[%s444 + $0x20] sm:$0xff] %v2321
        %2330 = vst [vmem:[%s444 + $0x28] sm:$0xff] %v2322
        %2331 = vst [vmem:[%s444 + $0x30] sm:$0xff] %v2323
        %2332 = vst [vmem:[%s444 + $0x38] sm:$0xff] %v2324
        %s2333 = sand.u32 %s217, 1
        %s2334 = scalar_lea.sflag [#allocation6], %s2333
        %s2335 = sand.u32 %s217, 1
        %s2336 = smul.addr %s2335, 64
        %s2337 = scalar_lea.vmem [#allocation18], %s2336
        // Predicated region
        $region85: #{tpu_custom_call.1} parent=51 // pred_check
          %p2338 = pneg %p227
        $region86: #{tpu_custom_call.1} parent=51 // pred_check_branch
          %2340 = sbr.rel (%p2338) target = $region88
        $region87: #{tpu_custom_call.1} parent=51 // pred_region
          %s2342 = ssub.s32 1024, 1024
          %2343 = vsyncadd %s2334, %s2342
          %s2344 = smul.addr %s31, 8
          %s2345 = smul.addr %s2344, 128
          %s2346 = scalar_lea.hbm %s8, %s2345
          %s2347 = sshll.u32 %s2337, 4
          %s2348 = int_to_ptr.vmem [resolvable:$true] %s2347
          %2353 = dma.vmem_to_hbm [thread:$0]  %s2348, 1024, %s2346, %s2334, 128, 128, 8
        $region88: #{tpu_custom_call.1} parent=51 // pred_fallthru
          _
      $region52: #{tpu_custom_call.1} parent=5 // pred_fallthru
        _
      %p2354 = scmp.le.s32.totalorder 2, %s26
      // Predicated region
      $region89: #{tpu_custom_call.1} parent=5 // pred_check
        %p2355 = pneg %p2354
      $region90: #{tpu_custom_call.1} parent=5 // pred_check_branch
        %2357 = sbr.rel (%p2355) target = $region92
      $region91: #{tpu_custom_call.1} parent=5 // pred_region
        %s2358 = ssub.s32 %s26, 2
        // Predicated region
        $region93: #{tpu_custom_call.1} parent=91 // pred_check
          %p2359 = pneg %p233
        $region94: #{tpu_custom_call.1} parent=91 // pred_check_branch
          %2361 = sbr.rel (%p2359) target = $region96
        $region95: #{tpu_custom_call.1} parent=91 // pred_region
          %s2362 = sand.u32 %s218, 1
          %s2363 = scalar_lea.sflag [#allocation6], %s2362
          %s2364 = sand.u32 %s218, 1
          %s2365 = smul.addr %s2364, 64
          %s2366 = scalar_lea.vmem [#allocation18], %s2365
          %2367 = dma.done %s2363, 1024
        $region96: #{tpu_custom_call.1} parent=91 // pred_fallthru
          _
      $region92: #{tpu_custom_call.1} parent=5 // pred_fallthru
        _
    $region6: #{tpu_custom_call.1} parent=1 // loop_footer
      %s30 = sadd.s32 1, %s26
    $region7: #{tpu_custom_call.1} parent=1 // loop_footer_branch
      %25 = sbr.rel target = $region3
    $region8: #{tpu_custom_call.1} parent=1 // loop_exit
      _
    %2368 = vsyncpa [#allocation5], 1
    %s2369 = scalar_lea.sflag [#allocation5], 1
    %2370 = vsyncpa %s2369, 1
    %2371 = vsyncpa [#allocation8], 1
    %s2372 = scalar_lea.sflag [#allocation8], 1
    %2373 = vsyncpa %s2372, 1
    %2374 = vsyncpa [#allocation11], 1
    %2375 = vsyncpa [#allocation14], 1
    %2376 = vsyncpa [#allocation17], 1
    %2377 = vsyncpa [#allocation6], 1
    %s2378 = scalar_lea.sflag [#allocation6], 1
    %2379 = vsyncpa %s2378, 1

</llo_original>
